<compile_context>
chip_gen: v5e
topology: v5e:2x2
jax: 0.10.0
libtpu: 0.0.40
codegen_flags: <defaults>
</compile_context>

<pallas_src>
import math

import jax
import jax.numpy as jnp
from jax import lax
from jax.experimental import pallas as pl
from jax.experimental.pallas import tpu as pltpu

# ----------------------------- config ---------------------------------------
BATCH = 2
SEQ = 8
HIDDEN = 32
NUM_HEADS = 4
HEAD_DIM = HIDDEN // NUM_HEADS          # 8
NUM_EXPERTS = 4
TOP_K = 2
INTERMEDIATE = 64
LN_EPS = 1e-5
M_RESIDUAL = 0.9                        # config.m_residual (not None -> scale branch taken)

TOKENS = BATCH * SEQ                    # 16 flattened tokens


# ----------------------------- in-kernel helpers -----------------------------
def _layernorm(x, gamma, beta):
    mean = jnp.mean(x, axis=-1, keepdims=True)
    var = jnp.mean(jnp.square(x - mean), axis=-1, keepdims=True)
    return (x - mean) * lax.rsqrt(var + LN_EPS) * gamma + beta


def _gelu_tanh(x):
    c = math.sqrt(2.0 / math.pi)
    return 0.5 * x * (1.0 + jnp.tanh(c * (x + 0.044715 * x * x * x)))


# --------------------- the fused transformer-block kernel --------------------
def _block_kernel(x_ref, g1_ref, b1_ref, wqkv_ref, bqkv_ref, wo_ref, bo_ref,
                  g2_ref, b2_ref, wr_ref, wfc_ref, bfc_ref, wp_ref, bp_ref,
                  o_ref, aux_ref):
    x = x_ref[...].astype(jnp.float32)                                       # (T, H)
    resid1 = x

    # ------------------------- LN1 + QKV projection --------------------------
    xn = _layernorm(x, g1_ref[...], b1_ref[...])
    qkv = jnp.dot(xn, wqkv_ref[...], preferred_element_type=jnp.float32) + bqkv_ref[...]

    # --------------- causal + same-sequence mask, built in-kernel ------------
    ri = lax.broadcasted_iota(jnp.int32, (TOKENS, TOKENS), 0)
    ci = lax.broadcasted_iota(jnp.int32, (TOKENS, TOKENS), 1)
    rseq = jnp.floor(ri.astype(jnp.float32) * (1.0 / SEQ))                   # sequence id
    cseq = jnp.floor(ci.astype(jnp.float32) * (1.0 / SEQ))
    allow = (rseq == cseq) & (ci <= ri)

    # -------------- multi-head causal attention (heads unrolled) -------------
    # No head concat: each head's context is folded into the output projection
    # by accumulating against the matching rows of W_o.
    scale = 1.0 / math.sqrt(HEAD_DIM)
    attn_out = None
    for h in range(NUM_HEADS):
        lo = h * HEAD_DIM
        qh = qkv[:, lo:lo + HEAD_DIM]
        kh = qkv[:, HIDDEN + lo:HIDDEN + lo + HEAD_DIM]
        vh = qkv[:, 2 * HIDDEN + lo:2 * HIDDEN + lo + HEAD_DIM]
        s = lax.dot_general(qh, kh, (((1,), (1,)), ((), ())),
                            preferred_element_type=jnp.float32) * scale      # (T, T)
        s = jnp.where(allow, s, -1e30)
        s = s - jnp.max(s, axis=-1, keepdims=True)
        p = jnp.exp(s)
        p = p / jnp.sum(p, axis=-1, keepdims=True)        # exact divide (parity w/ torch)
        oh = jnp.dot(p, vh, preferred_element_type=jnp.float32)              # (T, D)
        contrib = jnp.dot(oh, wo_ref[lo:lo + HEAD_DIM, :],
                          preferred_element_type=jnp.float32)                # (T, H)
        attn_out = contrib if attn_out is None else attn_out + contrib
    attn_out = attn_out + bo_ref[...]

    hmid = attn_out * M_RESIDUAL + resid1
    resid2 = hmid

    # ------------------------------ LN2 + router -----------------------------
    xn2 = _layernorm(hmid, g2_ref[...], b2_ref[...])
    logits = jnp.dot(xn2, wr_ref[...], preferred_element_type=jnp.float32)   # (T, E); no bias
    z = jnp.exp(logits - jnp.max(logits, axis=-1, keepdims=True))
    probs = z / jnp.sum(z, axis=-1, keepdims=True)

    # top-2 via max + masked second max (no sort); ties -> lowest index (== torch.topk)
    e_idx = lax.broadcasted_iota(jnp.int32, (TOKENS, NUM_EXPERTS), 1)
    m1 = jnp.max(probs, axis=-1, keepdims=True)
    i1 = jnp.min(jnp.where(probs == m1, e_idx, NUM_EXPERTS), axis=-1, keepdims=True)
    top1 = e_idx == i1
    masked = jnp.where(top1, -1.0, probs)
    m2 = jnp.max(masked, axis=-1, keepdims=True)
    i2 = jnp.min(jnp.where(masked == m2, e_idx, NUM_EXPERTS), axis=-1, keepdims=True)
    top2 = e_idx == i2

    # TODO(synk): verify the dolomite config renormalizes top-k weights to sum to 1;
    # some MoE variants use the raw softmax probabilities instead.
    rw = (jnp.where(top1, m1, 0.0) + jnp.where(top2, m2, 0.0)) / (m1 + m2)   # (T, E)

    # ------------------------- load-balancing aux loss ------------------------
    # TODO(synk): normalization may differ by a constant factor from the exact
    # HF/dolomite load_balancing_loss_func — verify against the reference before training.
    dispatch = top1.astype(jnp.float32) + top2.astype(jnp.float32)           # (T, E)
    f_e = jnp.sum(dispatch, axis=0, keepdims=True) * (1.0 / (TOKENS * TOP_K))
    p_e = jnp.sum(probs, axis=0, keepdims=True) * (1.0 / TOKENS)
    aux_ref[0, 0] = float(NUM_EXPERTS) * jnp.sum(f_e * p_e)                  # scalar -> SMEM

    # ---------- all experts as ONE concatenated (H, E*I) lane-dense matmul ----
    # TODO(synk): for large T, switch to scalar-prefetch token grouping instead of dense
    # all-expert compute, to avoid the E/TOP_K FLOP waste.
    h_fc = jnp.dot(xn2, wfc_ref[...], preferred_element_type=jnp.float32) + bfc_ref[...]
    h_fc = _gelu_tanh(h_fc)                                                  # (T, E*I)

    # Spread routing weights onto the (T, E*I) slab with one (T,E)x(E,E*I) matmul
    # against a 0/1 block matrix (no lane slicing / concatenation).
    sp_row = lax.broadcasted_iota(jnp.int32, (NUM_EXPERTS, NUM_EXPERTS * INTERMEDIATE), 0)
    sp_col = lax.broadcasted_iota(jnp.int32, (NUM_EXPERTS, NUM_EXPERTS * INTERMEDIATE), 1)
    spread = ((sp_col >= sp_row * INTERMEDIATE)
              & (sp_col < (sp_row + 1) * INTERMEDIATE)).astype(jnp.float32)  # (E, E*I)
    h_w = h_fc * jnp.dot(rw, spread, preferred_element_type=jnp.float32)     # (T, E*I)

    y = jnp.dot(h_w, wp_ref[...], preferred_element_type=jnp.float32)        # (T, H)
    y = y + jnp.dot(rw, bp_ref[...], preferred_element_type=jnp.float32)     # mixed per-expert bias

    o_ref[...] = (y * M_RESIDUAL + resid2).astype(o_ref.dtype)


# ----------------------------- block forward ---------------------------------
def moe_dolomite_block(x, params):
    B, S, H = x.shape
    assert (B, S, H) == (BATCH, SEQ, HIDDEN)
    x2 = x.reshape(B * S, H)

    vmem = pl.BlockSpec(memory_space=pltpu.MemorySpace.VMEM)
    smem = pl.BlockSpec(memory_space=pltpu.MemorySpace.SMEM)

    out, aux = pl.pallas_call(
        _block_kernel,
        out_shape=(jax.ShapeDtypeStruct((B * S, H), x.dtype),
                   jax.ShapeDtypeStruct((1, 1), jnp.float32)),
        in_specs=[vmem] * 14,
        out_specs=(vmem, smem),
    )(x2, params["ln1_g"], params["ln1_b"], params["w_qkv"], params["b_qkv"],
      params["w_o"], params["b_o"], params["ln2_g"], params["ln2_b"],
      params["w_router"], params["w_fc_cat"], params["b_fc_cat"],
      params["w_proj_cat"], params["b_proj_mat"])
    return out.reshape(B, S, H), aux[0, 0]


# ----------------------------- params ----------------------------------------
def init_params(key):
    ks = jax.random.split(key, 5)
    std = 0.02
    H, E, I = HIDDEN, NUM_EXPERTS, INTERMEDIATE
    w_fc = std * jax.random.normal(ks[3], (E, H, I), jnp.float32)
    b_fc = jnp.zeros((E, 1, I), jnp.float32)
    w_proj = std * jax.random.normal(ks[4], (E, I, H), jnp.float32)
    b_proj = jnp.zeros((E, 1, H), jnp.float32)
    return {
        "ln1_g": jnp.ones((1, H), jnp.float32),
        "ln1_b": jnp.zeros((1, H), jnp.float32),
        "ln2_g": jnp.ones((1, H), jnp.float32),
        "ln2_b": jnp.zeros((1, H), jnp.float32),
        "w_qkv": std * jax.random.normal(ks[0], (H, 3 * H), jnp.float32),
        "b_qkv": jnp.zeros((1, 3 * H), jnp.float32),
        "w_o": std * jax.random.normal(ks[1], (H, H), jnp.float32),
        "b_o": jnp.zeros((1, H), jnp.float32),
        "w_router": std * jax.random.normal(ks[2], (H, E), jnp.float32),  # router has no bias
        # Expert weights pre-packed ONCE at init into fused lane-dense layouts:
        #   w_fc_cat[:, e*I:(e+1)*I] == w_fc[e]   ;   w_proj_cat[e*I:(e+1)*I, :] == w_proj[e]
        "w_fc_cat": jnp.transpose(w_fc, (1, 0, 2)).reshape(H, E * I),
        "b_fc_cat": b_fc.reshape(1, E * I),
        "w_proj_cat": w_proj.reshape(E * I, H),
        "b_proj_mat": b_proj.reshape(E, H),
    }


# ----------------------------- main -------------------------------------------
if __name__ == "__main__":
    key = jax.random.PRNGKey(0)
    pkey, xkey = jax.random.split(key)
    params = init_params(pkey)
    x = jax.random.normal(xkey, (BATCH, SEQ, HIDDEN), jnp.float32)

    out, aux_loss = jax.jit(moe_dolomite_block)(x, params)
    jax.block_until_ready(out)
    jax.block_until_ready(aux_loss)

    assert out.shape == (BATCH, SEQ, HIDDEN)
    assert jnp.isfinite(out).all()
    assert jnp.isfinite(aux_loss)
    print("KERNEL_OK")
</pallas_src>

<mosaic_0001>
module attributes {stable_mosaic.version = 11 : i64} {
  func.func @_block_kernel(%arg0: memref<16x32xf32, #tpu.memory_space<vmem>>, %arg1: memref<1x32xf32, #tpu.memory_space<vmem>>, %arg2: memref<1x32xf32, #tpu.memory_space<vmem>>, %arg3: memref<32x96xf32, #tpu.memory_space<vmem>>, %arg4: memref<1x96xf32, #tpu.memory_space<vmem>>, %arg5: memref<32x32xf32, #tpu.memory_space<vmem>>, %arg6: memref<1x32xf32, #tpu.memory_space<vmem>>, %arg7: memref<1x32xf32, #tpu.memory_space<vmem>>, %arg8: memref<1x32xf32, #tpu.memory_space<vmem>>, %arg9: memref<32x4xf32, #tpu.memory_space<vmem>>, %arg10: memref<32x256xf32, #tpu.memory_space<vmem>>, %arg11: memref<1x256xf32, #tpu.memory_space<vmem>>, %arg12: memref<256x32xf32, #tpu.memory_space<vmem>>, %arg13: memref<4x32xf32, #tpu.memory_space<vmem>>, %arg14: memref<16x32xf32, #tpu.memory_space<vmem>>, %arg15: memref<1x1xf32, #tpu.memory_space<smem>>) attributes {dimension_semantics = [], scalar_prefetch = 0 : i64, scratch_operands = 0 : i64, tpu.core_type = #tpu.core_type<tc>} {
    %c0 = arith.constant 0 : index
    %c0_0 = arith.constant 0 : index
    %0 = vector.load %arg0[%c0, %c0_0] : memref<16x32xf32, #tpu.memory_space<vmem>>, vector<16x32xf32>
    %c0_1 = arith.constant 0 : index
    %c0_2 = arith.constant 0 : index
    %1 = vector.load %arg1[%c0_1, %c0_2] : memref<1x32xf32, #tpu.memory_space<vmem>>, vector<1x32xf32>
    %c0_3 = arith.constant 0 : index
    %c0_4 = arith.constant 0 : index
    %2 = vector.load %arg2[%c0_3, %c0_4] : memref<1x32xf32, #tpu.memory_space<vmem>>, vector<1x32xf32>
    %cst = arith.constant dense<0.000000e+00> : vector<16xf32>
    %3 = vector.multi_reduction <add>, %0, %cst [1] : vector<16x32xf32> to vector<16xf32>
    %4 = vector.shape_cast %3 : vector<16xf32> to vector<16x1xf32>
    %cst_5 = arith.constant 3.200000e+01 : f32
    %5 = vector.broadcast %cst_5 : f32 to vector<16x1xf32>
    %6 = arith.divf %4, %5 : vector<16x1xf32>
    %7 = vector.broadcast %6 : vector<16x1xf32> to vector<16x32xf32>
    %8 = arith.subf %0, %7 : vector<16x32xf32>
    %9 = arith.mulf %8, %8 : vector<16x32xf32>
    %cst_6 = arith.constant dense<0.000000e+00> : vector<16xf32>
    %10 = vector.multi_reduction <add>, %9, %cst_6 [1] : vector<16x32xf32> to vector<16xf32>
    %11 = vector.shape_cast %10 : vector<16xf32> to vector<16x1xf32>
    %cst_7 = arith.constant 3.200000e+01 : f32
    %12 = vector.broadcast %cst_7 : f32 to vector<16x1xf32>
    %13 = arith.divf %11, %12 : vector<16x1xf32>
    %14 = vector.broadcast %6 : vector<16x1xf32> to vector<16x32xf32>
    %15 = arith.subf %0, %14 : vector<16x32xf32>
    %cst_8 = arith.constant 9.99999974E-6 : f32
    %16 = vector.broadcast %cst_8 : f32 to vector<16x1xf32>
    %17 = arith.addf %13, %16 : vector<16x1xf32>
    %18 = math.rsqrt %17 : vector<16x1xf32>
    %19 = vector.broadcast %18 : vector<16x1xf32> to vector<16x32xf32>
    %20 = arith.mulf %15, %19 : vector<16x32xf32>
    %21 = vector.broadcast %1 : vector<1x32xf32> to vector<16x32xf32>
    %22 = arith.mulf %20, %21 : vector<16x32xf32>
    %23 = vector.broadcast %2 : vector<1x32xf32> to vector<16x32xf32>
    %24 = arith.addf %22, %23 : vector<16x32xf32>
    %c0_9 = arith.constant 0 : index
    %c0_10 = arith.constant 0 : index
    %25 = vector.load %arg3[%c0_9, %c0_10] : memref<32x96xf32, #tpu.memory_space<vmem>>, vector<32x96xf32>
    %cst_11 = arith.constant dense<0.000000e+00> : vector<16x96xf32>
    %26 = tpu.matmul %24, %25, %cst_11 {dimension_numbers = #tpu.dot_dimension_numbers<[1], [0], [0], [1], [0, 0, 1, 1], [], []>} : vector<16x32xf32>, vector<32x96xf32>, vector<16x96xf32> -> vector<16x96xf32>
    %c0_12 = arith.constant 0 : index
    %c0_13 = arith.constant 0 : index
    %27 = vector.load %arg4[%c0_12, %c0_13] : memref<1x96xf32, #tpu.memory_space<vmem>>, vector<1x96xf32>
    %28 = vector.broadcast %27 : vector<1x96xf32> to vector<16x96xf32>
    %29 = arith.addf %26, %28 : vector<16x96xf32>
    %30 = tpu.iota {dimensions = array<i32: 0>} : vector<16x16xi32>
    %31 = tpu.iota {dimensions = array<i32: 1>} : vector<16x16xi32>
    %32 = arith.sitofp %30 : vector<16x16xi32> to vector<16x16xf32>
    %cst_14 = arith.constant 1.250000e-01 : f32
    %33 = vector.broadcast %cst_14 : f32 to vector<16x16xf32>
    %34 = arith.mulf %32, %33 : vector<16x16xf32>
    %35 = math.floor %34 : vector<16x16xf32>
    %36 = arith.sitofp %31 : vector<16x16xi32> to vector<16x16xf32>
    %cst_15 = arith.constant 1.250000e-01 : f32
    %37 = vector.broadcast %cst_15 : f32 to vector<16x16xf32>
    %38 = arith.mulf %36, %37 : vector<16x16xf32>
    %39 = math.floor %38 : vector<16x16xf32>
    %40 = arith.cmpf oeq, %35, %39 : vector<16x16xf32>
    %41 = arith.cmpi sle, %31, %30 : vector<16x16xi32>
    %42 = arith.andi %40, %41 : vector<16x16xi1>
    %43 = vector.extract_strided_slice %29 {offsets = [0, 0], sizes = [16, 8], strides = [1, 1]} : vector<16x96xf32> to vector<16x8xf32>
    %44 = vector.extract_strided_slice %29 {offsets = [0, 32], sizes = [16, 8], strides = [1, 1]} : vector<16x96xf32> to vector<16x8xf32>
    %45 = vector.extract_strided_slice %29 {offsets = [0, 64], sizes = [16, 8], strides = [1, 1]} : vector<16x96xf32> to vector<16x8xf32>
    %cst_16 = arith.constant dense<0.000000e+00> : vector<16x16xf32>
    %46 = tpu.matmul %43, %44, %cst_16 {dimension_numbers = #tpu.dot_dimension_numbers<[1], [1], [0], [0], [0, 0, 1, 0], [], []>} : vector<16x8xf32>, vector<16x8xf32>, vector<16x16xf32> -> vector<16x16xf32>
    %cst_17 = arith.constant 0.353553385 : f32
    %47 = vector.broadcast %cst_17 : f32 to vector<16x16xf32>
    %48 = arith.mulf %46, %47 : vector<16x16xf32>
    %cst_18 = arith.constant -1.000000e+30 : f32
    %49 = vector.broadcast %cst_18 : f32 to vector<16x16xf32>
    %50 = arith.select %42, %48, %49 : vector<16x16xi1>, vector<16x16xf32>
    %cst_19 = arith.constant dense<0xFF800000> : vector<16xf32>
    %51 = vector.multi_reduction <maximumf>, %50, %cst_19 [1] : vector<16x16xf32> to vector<16xf32>
    %52 = vector.shape_cast %51 : vector<16xf32> to vector<16x1xf32>
    %53 = vector.broadcast %52 : vector<16x1xf32> to vector<16x16xf32>
    %54 = arith.subf %50, %53 : vector<16x16xf32>
    %55 = math.exp %54 : vector<16x16xf32>
    %cst_20 = arith.constant dense<0.000000e+00> : vector<16xf32>
    %56 = vector.multi_reduction <add>, %55, %cst_20 [1] : vector<16x16xf32> to vector<16xf32>
    %57 = vector.shape_cast %56 : vector<16xf32> to vector<16x1xf32>
    %58 = vector.broadcast %57 : vector<16x1xf32> to vector<16x16xf32>
    %59 = arith.divf %55, %58 : vector<16x16xf32>
    %cst_21 = arith.constant dense<0.000000e+00> : vector<16x8xf32>
    %60 = tpu.matmul %59, %45, %cst_21 {dimension_numbers = #tpu.dot_dimension_numbers<[1], [0], [0], [1], [0, 0, 1, 1], [], []>} : vector<16x16xf32>, vector<16x8xf32>, vector<16x8xf32> -> vector<16x8xf32>
    %c0_22 = arith.constant 0 : index
    %c0_23 = arith.constant 0 : index
    %61 = vector.load %arg5[%c0_22, %c0_23] : memref<32x32xf32, #tpu.memory_space<vmem>>, vector<8x32xf32>
    %cst_24 = arith.constant dense<0.000000e+00> : vector<16x32xf32>
    %62 = tpu.matmul %60, %61, %cst_24 {dimension_numbers = #tpu.dot_dimension_numbers<[1], [0], [0], [1], [0, 0, 1, 1], [], []>} : vector<16x8xf32>, vector<8x32xf32>, vector<16x32xf32> -> vector<16x32xf32>
    %63 = vector.extract_strided_slice %29 {offsets = [0, 8], sizes = [16, 8], strides = [1, 1]} : vector<16x96xf32> to vector<16x8xf32>
    %64 = vector.extract_strided_slice %29 {offsets = [0, 40], sizes = [16, 8], strides = [1, 1]} : vector<16x96xf32> to vector<16x8xf32>
    %65 = vector.extract_strided_slice %29 {offsets = [0, 72], sizes = [16, 8], strides = [1, 1]} : vector<16x96xf32> to vector<16x8xf32>
    %cst_25 = arith.constant dense<0.000000e+00> : vector<16x16xf32>
    %66 = tpu.matmul %63, %64, %cst_25 {dimension_numbers = #tpu.dot_dimension_numbers<[1], [1], [0], [0], [0, 0, 1, 0], [], []>} : vector<16x8xf32>, vector<16x8xf32>, vector<16x16xf32> -> vector<16x16xf32>
    %cst_26 = arith.constant 0.353553385 : f32
    %67 = vector.broadcast %cst_26 : f32 to vector<16x16xf32>
    %68 = arith.mulf %66, %67 : vector<16x16xf32>
    %cst_27 = arith.constant -1.000000e+30 : f32
    %69 = vector.broadcast %cst_27 : f32 to vector<16x16xf32>
    %70 = arith.select %42, %68, %69 : vector<16x16xi1>, vector<16x16xf32>
    %cst_28 = arith.constant dense<0xFF800000> : vector<16xf32>
    %71 = vector.multi_reduction <maximumf>, %70, %cst_28 [1] : vector<16x16xf32> to vector<16xf32>
    %72 = vector.shape_cast %71 : vector<16xf32> to vector<16x1xf32>
    %73 = vector.broadcast %72 : vector<16x1xf32> to vector<16x16xf32>
    %74 = arith.subf %70, %73 : vector<16x16xf32>
    %75 = math.exp %74 : vector<16x16xf32>
    %cst_29 = arith.constant dense<0.000000e+00> : vector<16xf32>
    %76 = vector.multi_reduction <add>, %75, %cst_29 [1] : vector<16x16xf32> to vector<16xf32>
    %77 = vector.shape_cast %76 : vector<16xf32> to vector<16x1xf32>
    %78 = vector.broadcast %77 : vector<16x1xf32> to vector<16x16xf32>
    %79 = arith.divf %75, %78 : vector<16x16xf32>
    %cst_30 = arith.constant dense<0.000000e+00> : vector<16x8xf32>
    %80 = tpu.matmul %79, %65, %cst_30 {dimension_numbers = #tpu.dot_dimension_numbers<[1], [0], [0], [1], [0, 0, 1, 1], [], []>} : vector<16x16xf32>, vector<16x8xf32>, vector<16x8xf32> -> vector<16x8xf32>
    %c8 = arith.constant 8 : index
    %c0_31 = arith.constant 0 : index
    %81 = vector.load %arg5[%c8, %c0_31] : memref<32x32xf32, #tpu.memory_space<vmem>>, vector<8x32xf32>
    %cst_32 = arith.constant dense<0.000000e+00> : vector<16x32xf32>
    %82 = tpu.matmul %80, %81, %cst_32 {dimension_numbers = #tpu.dot_dimension_numbers<[1], [0], [0], [1], [0, 0, 1, 1], [], []>} : vector<16x8xf32>, vector<8x32xf32>, vector<16x32xf32> -> vector<16x32xf32>
    %83 = arith.addf %62, %82 : vector<16x32xf32>
    %84 = vector.extract_strided_slice %29 {offsets = [0, 16], sizes = [16, 8], strides = [1, 1]} : vector<16x96xf32> to vector<16x8xf32>
    %85 = vector.extract_strided_slice %29 {offsets = [0, 48], sizes = [16, 8], strides = [1, 1]} : vector<16x96xf32> to vector<16x8xf32>
    %86 = vector.extract_strided_slice %29 {offsets = [0, 80], sizes = [16, 8], strides = [1, 1]} : vector<16x96xf32> to vector<16x8xf32>
    %cst_33 = arith.constant dense<0.000000e+00> : vector<16x16xf32>
    %87 = tpu.matmul %84, %85, %cst_33 {dimension_numbers = #tpu.dot_dimension_numbers<[1], [1], [0], [0], [0, 0, 1, 0], [], []>} : vector<16x8xf32>, vector<16x8xf32>, vector<16x16xf32> -> vector<16x16xf32>
    %cst_34 = arith.constant 0.353553385 : f32
    %88 = vector.broadcast %cst_34 : f32 to vector<16x16xf32>
    %89 = arith.mulf %87, %88 : vector<16x16xf32>
    %cst_35 = arith.constant -1.000000e+30 : f32
    %90 = vector.broadcast %cst_35 : f32 to vector<16x16xf32>
    %91 = arith.select %42, %89, %90 : vector<16x16xi1>, vector<16x16xf32>
    %cst_36 = arith.constant dense<0xFF800000> : vector<16xf32>
    %92 = vector.multi_reduction <maximumf>, %91, %cst_36 [1] : vector<16x16xf32> to vector<16xf32>
    %93 = vector.shape_cast %92 : vector<16xf32> to vector<16x1xf32>
    %94 = vector.broadcast %93 : vector<16x1xf32> to vector<16x16xf32>
    %95 = arith.subf %91, %94 : vector<16x16xf32>
    %96 = math.exp %95 : vector<16x16xf32>
    %cst_37 = arith.constant dense<0.000000e+00> : vector<16xf32>
    %97 = vector.multi_reduction <add>, %96, %cst_37 [1] : vector<16x16xf32> to vector<16xf32>
    %98 = vector.shape_cast %97 : vector<16xf32> to vector<16x1xf32>
    %99 = vector.broadcast %98 : vector<16x1xf32> to vector<16x16xf32>
    %100 = arith.divf %96, %99 : vector<16x16xf32>
    %cst_38 = arith.constant dense<0.000000e+00> : vector<16x8xf32>
    %101 = tpu.matmul %100, %86, %cst_38 {dimension_numbers = #tpu.dot_dimension_numbers<[1], [0], [0], [1], [0, 0, 1, 1], [], []>} : vector<16x16xf32>, vector<16x8xf32>, vector<16x8xf32> -> vector<16x8xf32>
    %c16 = arith.constant 16 : index
    %c0_39 = arith.constant 0 : index
    %102 = vector.load %arg5[%c16, %c0_39] : memref<32x32xf32, #tpu.memory_space<vmem>>, vector<8x32xf32>
    %cst_40 = arith.constant dense<0.000000e+00> : vector<16x32xf32>
    %103 = tpu.matmul %101, %102, %cst_40 {dimension_numbers = #tpu.dot_dimension_numbers<[1], [0], [0], [1], [0, 0, 1, 1], [], []>} : vector<16x8xf32>, vector<8x32xf32>, vector<16x32xf32> -> vector<16x32xf32>
    %104 = arith.addf %83, %103 : vector<16x32xf32>
    %105 = vector.extract_strided_slice %29 {offsets = [0, 24], sizes = [16, 8], strides = [1, 1]} : vector<16x96xf32> to vector<16x8xf32>
    %106 = vector.extract_strided_slice %29 {offsets = [0, 56], sizes = [16, 8], strides = [1, 1]} : vector<16x96xf32> to vector<16x8xf32>
    %107 = vector.extract_strided_slice %29 {offsets = [0, 88], sizes = [16, 8], strides = [1, 1]} : vector<16x96xf32> to vector<16x8xf32>
    %cst_41 = arith.constant dense<0.000000e+00> : vector<16x16xf32>
    %108 = tpu.matmul %105, %106, %cst_41 {dimension_numbers = #tpu.dot_dimension_numbers<[1], [1], [0], [0], [0, 0, 1, 0], [], []>} : vector<16x8xf32>, vector<16x8xf32>, vector<16x16xf32> -> vector<16x16xf32>
    %cst_42 = arith.constant 0.353553385 : f32
    %109 = vector.broadcast %cst_42 : f32 to vector<16x16xf32>
    %110 = arith.mulf %108, %109 : vector<16x16xf32>
    %cst_43 = arith.constant -1.000000e+30 : f32
    %111 = vector.broadcast %cst_43 : f32 to vector<16x16xf32>
    %112 = arith.select %42, %110, %111 : vector<16x16xi1>, vector<16x16xf32>
    %cst_44 = arith.constant dense<0xFF800000> : vector<16xf32>
    %113 = vector.multi_reduction <maximumf>, %112, %cst_44 [1] : vector<16x16xf32> to vector<16xf32>
    %114 = vector.shape_cast %113 : vector<16xf32> to vector<16x1xf32>
    %115 = vector.broadcast %114 : vector<16x1xf32> to vector<16x16xf32>
    %116 = arith.subf %112, %115 : vector<16x16xf32>
    %117 = math.exp %116 : vector<16x16xf32>
    %cst_45 = arith.constant dense<0.000000e+00> : vector<16xf32>
    %118 = vector.multi_reduction <add>, %117, %cst_45 [1] : vector<16x16xf32> to vector<16xf32>
    %119 = vector.shape_cast %118 : vector<16xf32> to vector<16x1xf32>
    %120 = vector.broadcast %119 : vector<16x1xf32> to vector<16x16xf32>
    %121 = arith.divf %117, %120 : vector<16x16xf32>
    %cst_46 = arith.constant dense<0.000000e+00> : vector<16x8xf32>
    %122 = tpu.matmul %121, %107, %cst_46 {dimension_numbers = #tpu.dot_dimension_numbers<[1], [0], [0], [1], [0, 0, 1, 1], [], []>} : vector<16x16xf32>, vector<16x8xf32>, vector<16x8xf32> -> vector<16x8xf32>
    %c24 = arith.constant 24 : index
    %c0_47 = arith.constant 0 : index
    %123 = vector.load %arg5[%c24, %c0_47] : memref<32x32xf32, #tpu.memory_space<vmem>>, vector<8x32xf32>
    %cst_48 = arith.constant dense<0.000000e+00> : vector<16x32xf32>
    %124 = tpu.matmul %122, %123, %cst_48 {dimension_numbers = #tpu.dot_dimension_numbers<[1], [0], [0], [1], [0, 0, 1, 1], [], []>} : vector<16x8xf32>, vector<8x32xf32>, vector<16x32xf32> -> vector<16x32xf32>
    %125 = arith.addf %104, %124 : vector<16x32xf32>
    %c0_49 = arith.constant 0 : index
    %c0_50 = arith.constant 0 : index
    %126 = vector.load %arg6[%c0_49, %c0_50] : memref<1x32xf32, #tpu.memory_space<vmem>>, vector<1x32xf32>
    %127 = vector.broadcast %126 : vector<1x32xf32> to vector<16x32xf32>
    %128 = arith.addf %125, %127 : vector<16x32xf32>
    %cst_51 = arith.constant 0.899999976 : f32
    %129 = vector.broadcast %cst_51 : f32 to vector<16x32xf32>
    %130 = arith.mulf %128, %129 : vector<16x32xf32>
    %131 = arith.addf %130, %0 : vector<16x32xf32>
    %c0_52 = arith.constant 0 : index
    %c0_53 = arith.constant 0 : index
    %132 = vector.load %arg7[%c0_52, %c0_53] : memref<1x32xf32, #tpu.memory_space<vmem>>, vector<1x32xf32>
    %c0_54 = arith.constant 0 : index
    %c0_55 = arith.constant 0 : index
    %133 = vector.load %arg8[%c0_54, %c0_55] : memref<1x32xf32, #tpu.memory_space<vmem>>, vector<1x32xf32>
    %cst_56 = arith.constant dense<0.000000e+00> : vector<16xf32>
    %134 = vector.multi_reduction <add>, %131, %cst_56 [1] : vector<16x32xf32> to vector<16xf32>
    %135 = vector.shape_cast %134 : vector<16xf32> to vector<16x1xf32>
    %cst_57 = arith.constant 3.200000e+01 : f32
    %136 = vector.broadcast %cst_57 : f32 to vector<16x1xf32>
    %137 = arith.divf %135, %136 : vector<16x1xf32>
    %138 = vector.broadcast %137 : vector<16x1xf32> to vector<16x32xf32>
    %139 = arith.subf %131, %138 : vector<16x32xf32>
    %140 = arith.mulf %139, %139 : vector<16x32xf32>
    %cst_58 = arith.constant dense<0.000000e+00> : vector<16xf32>
    %141 = vector.multi_reduction <add>, %140, %cst_58 [1] : vector<16x32xf32> to vector<16xf32>
    %142 = vector.shape_cast %141 : vector<16xf32> to vector<16x1xf32>
    %cst_59 = arith.constant 3.200000e+01 : f32
    %143 = vector.broadcast %cst_59 : f32 to vector<16x1xf32>
    %144 = arith.divf %142, %143 : vector<16x1xf32>
    %145 = vector.broadcast %137 : vector<16x1xf32> to vector<16x32xf32>
    %146 = arith.subf %131, %145 : vector<16x32xf32>
    %cst_60 = arith.constant 9.99999974E-6 : f32
    %147 = vector.broadcast %cst_60 : f32 to vector<16x1xf32>
    %148 = arith.addf %144, %147 : vector<16x1xf32>
    %149 = math.rsqrt %148 : vector<16x1xf32>
    %150 = vector.broadcast %149 : vector<16x1xf32> to vector<16x32xf32>
    %151 = arith.mulf %146, %150 : vector<16x32xf32>
    %152 = vector.broadcast %132 : vector<1x32xf32> to vector<16x32xf32>
    %153 = arith.mulf %151, %152 : vector<16x32xf32>
    %154 = vector.broadcast %133 : vector<1x32xf32> to vector<16x32xf32>
    %155 = arith.addf %153, %154 : vector<16x32xf32>
    %c0_61 = arith.constant 0 : index
    %c0_62 = arith.constant 0 : index
    %156 = vector.load %arg9[%c0_61, %c0_62] : memref<32x4xf32, #tpu.memory_space<vmem>>, vector<32x4xf32>
    %cst_63 = arith.constant dense<0.000000e+00> : vector<16x4xf32>
    %157 = tpu.matmul %155, %156, %cst_63 {dimension_numbers = #tpu.dot_dimension_numbers<[1], [0], [0], [1], [0, 0, 1, 1], [], []>} : vector<16x32xf32>, vector<32x4xf32>, vector<16x4xf32> -> vector<16x4xf32>
    %cst_64 = arith.constant dense<0xFF800000> : vector<16xf32>
    %158 = vector.multi_reduction <maximumf>, %157, %cst_64 [1] : vector<16x4xf32> to vector<16xf32>
    %159 = vector.shape_cast %158 : vector<16xf32> to vector<16x1xf32>
    %160 = vector.broadcast %159 : vector<16x1xf32> to vector<16x4xf32>
    %161 = arith.subf %157, %160 : vector<16x4xf32>
    %162 = math.exp %161 : vector<16x4xf32>
    %cst_65 = arith.constant dense<0.000000e+00> : vector<16xf32>
    %163 = vector.multi_reduction <add>, %162, %cst_65 [1] : vector<16x4xf32> to vector<16xf32>
    %164 = vector.shape_cast %163 : vector<16xf32> to vector<16x1xf32>
    %165 = vector.broadcast %164 : vector<16x1xf32> to vector<16x4xf32>
    %166 = arith.divf %162, %165 : vector<16x4xf32>
    %167 = tpu.iota {dimensions = array<i32: 1>} : vector<16x4xi32>
    %cst_66 = arith.constant dense<0xFF800000> : vector<16xf32>
    %168 = vector.multi_reduction <maximumf>, %166, %cst_66 [1] : vector<16x4xf32> to vector<16xf32>
    %169 = vector.shape_cast %168 : vector<16xf32> to vector<16x1xf32>
    %170 = vector.broadcast %169 : vector<16x1xf32> to vector<16x4xf32>
    %171 = arith.cmpf oeq, %166, %170 : vector<16x4xf32>
    %c4_i32 = arith.constant 4 : i32
    %172 = vector.broadcast %c4_i32 : i32 to vector<16x4xi32>
    %173 = arith.select %171, %167, %172 : vector<16x4xi1>, vector<16x4xi32>
    %cst_67 = arith.constant dense<2147483647> : vector<16xi32>
    %174 = vector.multi_reduction <minsi>, %173, %cst_67 [1] : vector<16x4xi32> to vector<16xi32>
    %175 = vector.shape_cast %174 : vector<16xi32> to vector<16x1xi32>
    %176 = vector.broadcast %175 : vector<16x1xi32> to vector<16x4xi32>
    %177 = arith.cmpi eq, %167, %176 : vector<16x4xi32>
    %cst_68 = arith.constant -1.000000e+00 : f32
    %178 = vector.broadcast %cst_68 : f32 to vector<16x4xf32>
    %179 = arith.select %177, %178, %166 : vector<16x4xi1>, vector<16x4xf32>
    %cst_69 = arith.constant dense<0xFF800000> : vector<16xf32>
    %180 = vector.multi_reduction <maximumf>, %179, %cst_69 [1] : vector<16x4xf32> to vector<16xf32>
    %181 = vector.shape_cast %180 : vector<16xf32> to vector<16x1xf32>
    %182 = vector.broadcast %181 : vector<16x1xf32> to vector<16x4xf32>
    %183 = arith.cmpf oeq, %179, %182 : vector<16x4xf32>
    %c4_i32_70 = arith.constant 4 : i32
    %184 = vector.broadcast %c4_i32_70 : i32 to vector<16x4xi32>
    %185 = arith.select %183, %167, %184 : vector<16x4xi1>, vector<16x4xi32>
    %cst_71 = arith.constant dense<2147483647> : vector<16xi32>
    %186 = vector.multi_reduction <minsi>, %185, %cst_71 [1] : vector<16x4xi32> to vector<16xi32>
    %187 = vector.shape_cast %186 : vector<16xi32> to vector<16x1xi32>
    %188 = vector.broadcast %187 : vector<16x1xi32> to vector<16x4xi32>
    %189 = arith.cmpi eq, %167, %188 : vector<16x4xi32>
    %cst_72 = arith.constant 0.000000e+00 : f32
    %190 = vector.shape_cast %169 : vector<16x1xf32> to vector<16x1xf32>
    %191 = vector.broadcast %190 : vector<16x1xf32> to vector<16x4xf32>
    %192 = vector.broadcast %cst_72 : f32 to vector<16x4xf32>
    %193 = arith.select %177, %191, %192 : vector<16x4xi1>, vector<16x4xf32>
    %cst_73 = arith.constant 0.000000e+00 : f32
    %194 = vector.shape_cast %181 : vector<16x1xf32> to vector<16x1xf32>
    %195 = vector.broadcast %194 : vector<16x1xf32> to vector<16x4xf32>
    %196 = vector.broadcast %cst_73 : f32 to vector<16x4xf32>
    %197 = arith.select %189, %195, %196 : vector<16x4xi1>, vector<16x4xf32>
    %198 = arith.addf %193, %197 : vector<16x4xf32>
    %199 = arith.addf %169, %181 : vector<16x1xf32>
    %200 = vector.broadcast %199 : vector<16x1xf32> to vector<16x4xf32>
    %201 = arith.divf %198, %200 : vector<16x4xf32>
    %202 = arith.extui %177 : vector<16x4xi1> to vector<16x4xi32>
    %203 = arith.sitofp %202 : vector<16x4xi32> to vector<16x4xf32>
    %204 = arith.extui %189 : vector<16x4xi1> to vector<16x4xi32>
    %205 = arith.sitofp %204 : vector<16x4xi32> to vector<16x4xf32>
    %206 = arith.addf %203, %205 : vector<16x4xf32>
    %cst_74 = arith.constant dense<0.000000e+00> : vector<4xf32>
    %207 = vector.multi_reduction <add>, %206, %cst_74 [0] : vector<16x4xf32> to vector<4xf32>
    %208 = vector.shape_cast %207 : vector<4xf32> to vector<1x4xf32>
    %cst_75 = arith.constant 3.125000e-02 : f32
    %209 = vector.broadcast %cst_75 : f32 to vector<1x4xf32>
    %210 = arith.mulf %208, %209 : vector<1x4xf32>
    %cst_76 = arith.constant dense<0.000000e+00> : vector<4xf32>
    %211 = vector.multi_reduction <add>, %166, %cst_76 [0] : vector<16x4xf32> to vector<4xf32>
    %212 = vector.shape_cast %211 : vector<4xf32> to vector<1x4xf32>
    %cst_77 = arith.constant 6.250000e-02 : f32
    %213 = vector.broadcast %cst_77 : f32 to vector<1x4xf32>
    %214 = arith.mulf %212, %213 : vector<1x4xf32>
    %215 = arith.mulf %210, %214 : vector<1x4xf32>
    %216 = vector.shape_cast %215 : vector<1x4xf32> to vector<1x1x4xf32>
    %cst_78 = arith.constant dense<0.000000e+00> : vector<1xf32>
    %217 = vector.multi_reduction <add>, %216, %cst_78 [1, 2] : vector<1x1x4xf32> to vector<1xf32>
    %218 = vector.shape_cast %217 : vector<1xf32> to vector<1x1x1xf32>
    %219 = vector.extract %218[0, 0, 0] : f32 from vector<1x1x1xf32>
    %cst_79 = arith.constant 4.000000e+00 : f32
    %220 = arith.mulf %cst_79, %219 : f32
    %c0_80 = arith.constant 0 : index
    %c0_81 = arith.constant 0 : index
    %221 = memref.load %arg15[%c0_80, %c0_81] : memref<1x1xf32, #tpu.memory_space<smem>>
    memref.store %220, %arg15[%c0_80, %c0_81] : memref<1x1xf32, #tpu.memory_space<smem>>
    %c0_82 = arith.constant 0 : index
    %c0_83 = arith.constant 0 : index
    %222 = vector.load %arg10[%c0_82, %c0_83] : memref<32x256xf32, #tpu.memory_space<vmem>>, vector<32x256xf32>
    %cst_84 = arith.constant dense<0.000000e+00> : vector<16x256xf32>
    %223 = tpu.matmul %155, %222, %cst_84 {dimension_numbers = #tpu.dot_dimension_numbers<[1], [0], [0], [1], [0, 0, 1, 1], [], []>} : vector<16x32xf32>, vector<32x256xf32>, vector<16x256xf32> -> vector<16x256xf32>
    %c0_85 = arith.constant 0 : index
    %c0_86 = arith.constant 0 : index
    %224 = vector.load %arg11[%c0_85, %c0_86] : memref<1x256xf32, #tpu.memory_space<vmem>>, vector<1x256xf32>
    %225 = vector.broadcast %224 : vector<1x256xf32> to vector<16x256xf32>
    %226 = arith.addf %223, %225 : vector<16x256xf32>
    %cst_87 = arith.constant 5.000000e-01 : f32
    %227 = vector.broadcast %cst_87 : f32 to vector<16x256xf32>
    %228 = arith.mulf %227, %226 : vector<16x256xf32>
    %cst_88 = arith.constant 4.471500e-02 : f32
    %229 = vector.broadcast %cst_88 : f32 to vector<16x256xf32>
    %230 = arith.mulf %229, %226 : vector<16x256xf32>
    %231 = arith.mulf %230, %226 : vector<16x256xf32>
    %232 = arith.mulf %231, %226 : vector<16x256xf32>
    %233 = arith.addf %226, %232 : vector<16x256xf32>
    %cst_89 = arith.constant 0.797884583 : f32
    %234 = vector.broadcast %cst_89 : f32 to vector<16x256xf32>
    %235 = arith.mulf %234, %233 : vector<16x256xf32>
    %236 = math.tanh %235 : vector<16x256xf32>
    %cst_90 = arith.constant 1.000000e+00 : f32
    %237 = vector.broadcast %cst_90 : f32 to vector<16x256xf32>
    %238 = arith.addf %237, %236 : vector<16x256xf32>
    %239 = arith.mulf %228, %238 : vector<16x256xf32>
    %240 = tpu.iota {dimensions = array<i32: 0>} : vector<4x256xi32>
    %241 = tpu.iota {dimensions = array<i32: 1>} : vector<4x256xi32>
    %c64_i32 = arith.constant 64 : i32
    %242 = vector.broadcast %c64_i32 : i32 to vector<4x256xi32>
    %243 = arith.muli %240, %242 : vector<4x256xi32>
    %244 = arith.cmpi sge, %241, %243 : vector<4x256xi32>
    %c1_i32 = arith.constant 1 : i32
    %245 = vector.broadcast %c1_i32 : i32 to vector<4x256xi32>
    %246 = arith.addi %240, %245 : vector<4x256xi32>
    %c64_i32_91 = arith.constant 64 : i32
    %247 = vector.broadcast %c64_i32_91 : i32 to vector<4x256xi32>
    %248 = arith.muli %246, %247 : vector<4x256xi32>
    %249 = arith.cmpi slt, %241, %248 : vector<4x256xi32>
    %250 = arith.andi %244, %249 : vector<4x256xi1>
    %251 = arith.extui %250 : vector<4x256xi1> to vector<4x256xi32>
    %252 = arith.sitofp %251 : vector<4x256xi32> to vector<4x256xf32>
    %cst_92 = arith.constant dense<0.000000e+00> : vector<16x256xf32>
    %253 = tpu.matmul %201, %252, %cst_92 {dimension_numbers = #tpu.dot_dimension_numbers<[1], [0], [0], [1], [0, 0, 1, 1], [], []>} : vector<16x4xf32>, vector<4x256xf32>, vector<16x256xf32> -> vector<16x256xf32>
    %254 = arith.mulf %239, %253 : vector<16x256xf32>
    %c0_93 = arith.constant 0 : index
    %c0_94 = arith.constant 0 : index
    %255 = vector.load %arg12[%c0_93, %c0_94] : memref<256x32xf32, #tpu.memory_space<vmem>>, vector<256x32xf32>
    %cst_95 = arith.constant dense<0.000000e+00> : vector<16x32xf32>
    %256 = tpu.matmul %254, %255, %cst_95 {dimension_numbers = #tpu.dot_dimension_numbers<[1], [0], [0], [1], [0, 0, 1, 1], [], []>} : vector<16x256xf32>, vector<256x32xf32>, vector<16x32xf32> -> vector<16x32xf32>
    %c0_96 = arith.constant 0 : index
    %c0_97 = arith.constant 0 : index
    %257 = vector.load %arg13[%c0_96, %c0_97] : memref<4x32xf32, #tpu.memory_space<vmem>>, vector<4x32xf32>
    %cst_98 = arith.constant dense<0.000000e+00> : vector<16x32xf32>
    %258 = tpu.matmul %201, %257, %cst_98 {dimension_numbers = #tpu.dot_dimension_numbers<[1], [0], [0], [1], [0, 0, 1, 1], [], []>} : vector<16x4xf32>, vector<4x32xf32>, vector<16x32xf32> -> vector<16x32xf32>
    %259 = arith.addf %256, %258 : vector<16x32xf32>
    %cst_99 = arith.constant 0.899999976 : f32
    %260 = vector.broadcast %cst_99 : f32 to vector<16x32xf32>
    %261 = arith.mulf %259, %260 : vector<16x32xf32>
    %262 = arith.addf %261, %131 : vector<16x32xf32>
    %c0_100 = arith.constant 0 : index
    %c0_101 = arith.constant 0 : index
    %263 = vector.load %arg14[%c0_100, %c0_101] : memref<16x32xf32, #tpu.memory_space<vmem>>, vector<16x32xf32>
    tpu.vector_store %arg14[%c0_100, %c0_101], %262 {strides = array<i32>} : memref<16x32xf32, #tpu.memory_space<vmem>>, vector<16x32xf32>,
    return
  }
}

</mosaic_0001>

<llo_original>
// kernel: moe_dolomite_block.1
$region0: #{moe_dolomite_block.1}
  #allocation0 [shape = 'u32[]', space=smem, size = 0x4, offset = 0x4, fixed_abs, tag = 'smem constant byte address 0x4 - core index']
  #allocation1 [shape = 'u32[72,128]{1,0:T(1,128)}', space=vmem, size = 0x9000, scoped, tag = 'internal scratch']
  %s0 = inlined_call_operand.vmem [shape: f32[16,32], index: 0, kind: input, shape index: {}]
  %s1 = inlined_call_operand.vmem [shape: f32[1,32], index: 1, kind: input, shape index: {}]
  %s2 = inlined_call_operand.vmem [shape: f32[1,32], index: 2, kind: input, shape index: {}]
  %s3 = inlined_call_operand.vmem [shape: f32[32,96], index: 3, kind: input, shape index: {}]
  %s4 = inlined_call_operand.vmem [shape: f32[1,96], index: 4, kind: input, shape index: {}]
  %s5 = inlined_call_operand.vmem [shape: f32[32,32], index: 5, kind: input, shape index: {}]
  %s6 = inlined_call_operand.vmem [shape: f32[1,32], index: 6, kind: input, shape index: {}]
  %s7 = inlined_call_operand.vmem [shape: f32[1,32], index: 7, kind: input, shape index: {}]
  %s8 = inlined_call_operand.vmem [shape: f32[1,32], index: 8, kind: input, shape index: {}]
  %s9 = inlined_call_operand.vmem [shape: f32[32,4], index: 9, kind: input, shape index: {}]
  %s10 = inlined_call_operand.vmem [shape: f32[32,256], index: 10, kind: input, shape index: {}]
  %s11 = inlined_call_operand.vmem [shape: f32[1,256], index: 11, kind: input, shape index: {}]
  %s12 = inlined_call_operand.vmem [shape: f32[256,32], index: 12, kind: input, shape index: {}]
  %s13 = inlined_call_operand.vmem [shape: f32[4,32], index: 13, kind: input, shape index: {}]
  %s14 = inlined_call_operand.hbm [shape: f32[16,32], index: 14, kind: output, shape index: {0}]
  %s15 = inlined_call_operand.hbm [shape: f32[1,1], index: 15, kind: output, shape index: {1}]
  %16 = xla_tuple %s14, %s15
  %s17 = sld [smem:[#allocation0]]
  $region74: #{moe_dolomite_block.1} parent=0
    _
  %s19 = ssub.s32 1, %s17
  %s20 = scalar_select 0, %s19, %s17
  $region1: #{moe_dolomite_block.1} parent=0
    #allocation2 [shape = 'u8[8192]{0}', space=vmem, size = 0x2000, scoped, tag = 'output window, operand 0, single buffered']
    #allocation3 [shape = 's32[1]{0}', space=sflag, size = 0x4, scoped, tag = 'scoped memory for moe_dolomite_block.1']
    #allocation4 [shape = 's32[1]{0}', space=sflag, size = 0x4, scoped, tag = 'scoped memory for moe_dolomite_block.1']
    #allocation5 [shape = 'u8[512]{0}', space=smem, size = 0x200, scoped, tag = 'output window, operand 1, single buffered']
    %21 = vsyncpa [#allocation3], 0
    %22 = vsyncpa [#allocation4], 0
    // Predicated region
    $region2: #{moe_dolomite_block.1} parent=1 // pred_check
      _
    $region3: #{moe_dolomite_block.1} parent=1 // pred_check_branch
      %24 = sbr.rel (0) target = $region5
    $region4: #{moe_dolomite_block.1} parent=1 // pred_region
      _
    $region5: #{moe_dolomite_block.1} parent=1 // pred_fallthru
      _
    // Predicated region
    $region6: #{moe_dolomite_block.1} parent=1 // pred_check
      _
    $region7: #{moe_dolomite_block.1} parent=1 // pred_check_branch
      %26 = sbr.rel (0) target = $region9
    $region8: #{moe_dolomite_block.1} parent=1 // pred_region
      _
    $region9: #{moe_dolomite_block.1} parent=1 // pred_fallthru
      _
    // Predicated region
    $region10: #{moe_dolomite_block.1} parent=1 // pred_check
      _
    $region11: #{moe_dolomite_block.1} parent=1 // pred_check_branch
      %28 = sbr.rel (0) target = $region13
    $region12: #{moe_dolomite_block.1} parent=1 // pred_region
      _
    $region13: #{moe_dolomite_block.1} parent=1 // pred_fallthru
      _
    // Predicated region
    $region14: #{moe_dolomite_block.1} parent=1 // pred_check
      _
    $region15: #{moe_dolomite_block.1} parent=1 // pred_check_branch
      %30 = sbr.rel (0) target = $region17
    $region16: #{moe_dolomite_block.1} parent=1 // pred_region
      _
    $region17: #{moe_dolomite_block.1} parent=1 // pred_fallthru
      _
    // Predicated region
    $region18: #{moe_dolomite_block.1} parent=1 // pred_check
      _
    $region19: #{moe_dolomite_block.1} parent=1 // pred_check_branch
      %32 = sbr.rel (0) target = $region21
    $region20: #{moe_dolomite_block.1} parent=1 // pred_region
      _
    $region21: #{moe_dolomite_block.1} parent=1 // pred_fallthru
      _
    // Predicated region
    $region22: #{moe_dolomite_block.1} parent=1 // pred_check
      _
    $region23: #{moe_dolomite_block.1} parent=1 // pred_check_branch
      %34 = sbr.rel (0) target = $region25
    $region24: #{moe_dolomite_block.1} parent=1 // pred_region
      _
    $region25: #{moe_dolomite_block.1} parent=1 // pred_fallthru
      _
    // Predicated region
    $region26: #{moe_dolomite_block.1} parent=1 // pred_check
      _
    $region27: #{moe_dolomite_block.1} parent=1 // pred_check_branch
      %36 = sbr.rel (0) target = $region29
    $region28: #{moe_dolomite_block.1} parent=1 // pred_region
      _
    $region29: #{moe_dolomite_block.1} parent=1 // pred_fallthru
      _
    // Predicated region
    $region30: #{moe_dolomite_block.1} parent=1 // pred_check
      _
    $region31: #{moe_dolomite_block.1} parent=1 // pred_check_branch
      %38 = sbr.rel (0) target = $region33
    $region32: #{moe_dolomite_block.1} parent=1 // pred_region
      _
    $region33: #{moe_dolomite_block.1} parent=1 // pred_fallthru
      _
    // Predicated region
    $region34: #{moe_dolomite_block.1} parent=1 // pred_check
      _
    $region35: #{moe_dolomite_block.1} parent=1 // pred_check_branch
      %40 = sbr.rel (0) target = $region37
    $region36: #{moe_dolomite_block.1} parent=1 // pred_region
      _
    $region37: #{moe_dolomite_block.1} parent=1 // pred_fallthru
      _
    // Predicated region
    $region38: #{moe_dolomite_block.1} parent=1 // pred_check
      _
    $region39: #{moe_dolomite_block.1} parent=1 // pred_check_branch
      %42 = sbr.rel (0) target = $region41
    $region40: #{moe_dolomite_block.1} parent=1 // pred_region
      _
    $region41: #{moe_dolomite_block.1} parent=1 // pred_fallthru
      _
    // Predicated region
    $region42: #{moe_dolomite_block.1} parent=1 // pred_check
      _
    $region43: #{moe_dolomite_block.1} parent=1 // pred_check_branch
      %44 = sbr.rel (0) target = $region45
    $region44: #{moe_dolomite_block.1} parent=1 // pred_region
      _
    $region45: #{moe_dolomite_block.1} parent=1 // pred_fallthru
      _
    // Predicated region
    $region46: #{moe_dolomite_block.1} parent=1 // pred_check
      _
    $region47: #{moe_dolomite_block.1} parent=1 // pred_check_branch
      %46 = sbr.rel (0) target = $region49
    $region48: #{moe_dolomite_block.1} parent=1 // pred_region
      _
    $region49: #{moe_dolomite_block.1} parent=1 // pred_fallthru
      _
    // Predicated region
    $region50: #{moe_dolomite_block.1} parent=1 // pred_check
      _
    $region51: #{moe_dolomite_block.1} parent=1 // pred_check_branch
      %48 = sbr.rel (0) target = $region53
    $region52: #{moe_dolomite_block.1} parent=1 // pred_region
      _
    $region53: #{moe_dolomite_block.1} parent=1 // pred_fallthru
      _
    // Predicated region
    $region54: #{moe_dolomite_block.1} parent=1 // pred_check
      _
    $region55: #{moe_dolomite_block.1} parent=1 // pred_check_branch
      %50 = sbr.rel (0) target = $region57
    $region56: #{moe_dolomite_block.1} parent=1 // pred_region
      _
    $region57: #{moe_dolomite_block.1} parent=1 // pred_fallthru
      _
    %v51 = vld [vmem:[%s0] sm:$0xff]
    %v52 = vld [vmem:[%s0 + $0x8] sm:$0xff]
    %v53 = vld [vmem:[%s1] sm:$0x1]
    %v54 = vld [vmem:[%s2] sm:$0x1]
    %vm55 = vcmask 261120
    %v56 = vsel %vm55, %v51, 0.0
    %57 = vadd.xlane.f32.xlu0 %v56
    %v58 = vpop.xlane.xlu0 %57
    %v59 = vsel %vm55, %v52, 0.0
    %60 = vadd.xlane.f32.xlu0 %v59
    %v61 = vpop.xlane.xlu0 %60
    %v62 = vrcp.pop 32.0
    %v63 = vmul.f32 32.0, %v62
    %v64 = vsub.f32 1.0, %v63
    %v65 = vmul.f32 %v62, %v64
    %v66 = vadd.f32 %v62, %v65
    %vm67 = vweird.f32 %v62
    %v68 = vsel %vm67, %v62, %v66
    %v69 = vmul.f32 %v58, %v68
    %v70 = vmul.f32 %v61, %v68
    %v71 = vsub.f32 %v51, %v69
    %v72 = vsub.f32 %v52, %v70
    %v73 = vmul.f32 %v71, %v71
    %v74 = vmul.f32 %v72, %v72
    %v75 = vsel %vm55, %v73, 0.0
    %76 = vadd.xlane.f32.xlu0 %v75
    %v77 = vpop.xlane.xlu0 %76
    %v78 = vsel %vm55, %v74, 0.0
    %79 = vadd.xlane.f32.xlu0 %v78
    %v80 = vpop.xlane.xlu0 %79
    %v81 = vmul.f32 %v77, %v68
    %v82 = vmul.f32 %v80, %v68
    %v83 = vadd.f32 %v81, 1e-05
    %v84 = vadd.f32 %v82, 1e-05
    %v85 = vrsqrt.pop %v83
    %v86 = vmul.f32 %v85, %v83
    %v87 = vmul.f32 %v86, %v85
    %v88 = vmul.f32 0.5, %v87
    %v89 = vsub.f32 1.5, %v88
    %v90 = vmul.f32 %v85, %v89
    %vm91 = vweird.f32 %v83
    %vm92 = vweird.f32 %v85
    %vm93 = vmor %vm91, %vm92
    %v94 = vsel %vm93, %v85, %v90
    %v95 = vrsqrt.pop %v84
    %v96 = vmul.f32 %v95, %v84
    %v97 = vmul.f32 %v96, %v95
    %v98 = vmul.f32 0.5, %v97
    %v99 = vsub.f32 1.5, %v98
    %v100 = vmul.f32 %v95, %v99
    %vm101 = vweird.f32 %v84
    %vm102 = vweird.f32 %v95
    %vm103 = vmor %vm101, %vm102
    %v104 = vsel %vm103, %v95, %v100
    %v105 = vmul.f32 %v71, %v94
    %v106 = vmul.f32 %v72, %v104
    %v108 = vperm.slane %v53, 0
    %v110 = vmul.f32 %v105, %v108
    %v111 = vmul.f32 %v106, %v108
    %v113 = vperm.slane %v54, 0
    %v115 = vadd.f32 %v110, %v113
    %v116 = vadd.f32 %v111, %v113
    %v117 = vld [vmem:[%s3] sm:$0xff]
    %v118 = vld [vmem:[%s3 + $0x8] sm:$0xff]
    %v119 = vld [vmem:[%s3 + $0x10] sm:$0xff]
    %v120 = vld [vmem:[%s3 + $0x18] sm:$0xff]
    %v121 = vld [vmem:[%s4] sm:$0x1]
    %v123 = vperm.slane %v121, 0
    %v126 = vsel %vm55, %v115, 0
    %v129 = vsel %vm55, %v116, 0
    %131 = vmatpush.msra.mxu0 0.0
    %132 = vmatpush.msra.mxu0 0.0
    %133 = vmatpush.msra.mxu0 0.0
    %134 = vmatpush.msra.mxu0 0.0
    %135 = vmatpush.msra.mxu0 0.0
    %136 = vmatpush.msra.mxu0 0.0
    %137 = vmatpush.msra.mxu0 0.0
    %138 = vmatpush.msra.mxu0 0.0
    %139 = vmatpush.msra.mxu0 0.0
    %140 = vmatpush.msra.mxu0 0.0
    %141 = vmatpush.msra.mxu0 0.0
    %142 = vmatpush.msra.mxu0 0.0
    %143 = vmatpush.msra.mxu0 %v120
    %144 = vmatpush.msra.mxu0 %v119
    %145 = vmatpush.msra.mxu0 %v118
    %146 = vmatpush.msra.mxu0 %v117
    %147 = vmatmul.f32.gmra.mxu0 %v126
    %v148 = vpop.f32.mrf.mxu0
    %v149 = vadd.f32 %v123, %v148
    %150 = vmatmul.f32.gmra.mxu0 %v129
    %v151 = vpop.f32.mrf.mxu0
    %v152 = vadd.f32 %v123, %v151
    %153 = vdwg.mxu0
    %v154 = vlaneseq
    %v155 = vshrl.u32 %v154, 7
    %v156 = vadd.s32 %v155, 8
    %v157 = vlaneseq
    %v158 = vand.u32 %v157, 127
    %v159 = vcvt.s32.f32 %v155
    %v160 = vcvt.s32.f32 %v156
    %v161 = vmul.f32 %v159, 0.125
    %v162 = vmul.f32 %v160, 0.125
    %v163 = vfloor.f32 %v161
    %v164 = vfloor.f32 %v162
    %v165 = vcvt.s32.f32 %v158
    %v166 = vmul.f32 %v165, 0.125
    %v167 = vfloor.f32 %v166
    %vm168 = vcmp.eq.f32.partialorder %v163, %v167
    %vm169 = vcmp.eq.f32.partialorder %v164, %v167
    %vm170 = vcmp.le.s32.totalorder %v158, %v155
    %vm171 = vcmp.le.s32.totalorder %v158, %v156
    %vm172 = vmand %vm168, %vm170
    %vm173 = vmand %vm169, %vm171
    %176 = vrot.lane.b32.xlu0 %v149, 96
    %v177 = vpop.permute.xlu0 %176
    %178 = vrot.lane.b32.xlu0 %v152, 96
    %v179 = vpop.permute.xlu0 %178
    %vm180 = vcmask 64512
    %v181 = vsel %vm180, %v149, 0
    %v183 = vsel %vm180, %v152, 0
    %v185 = vsel %vm180, %v177, 0
    %v187 = vsel %vm180, %v179, 0
    %189 = vmatpush.xpose.msra.mxu0 0.0
    %190 = vmatpush.xpose.msra.mxu0 0.0
    %191 = vmatpush.xpose.msra.mxu0 0.0
    %192 = vmatpush.xpose.msra.mxu0 0.0
    %193 = vmatpush.xpose.msra.mxu0 0.0
    %194 = vmatpush.xpose.msra.mxu0 0.0
    %195 = vmatpush.xpose.msra.mxu0 0.0
    %196 = vmatpush.xpose.msra.mxu0 0.0
    %197 = vmatpush.xpose.msra.mxu0 0.0
    %198 = vmatpush.xpose.msra.mxu0 0.0
    %199 = vmatpush.xpose.msra.mxu0 0.0
    %200 = vmatpush.xpose.msra.mxu0 0.0
    %201 = vmatpush.xpose.msra.mxu0 0.0
    %202 = vmatpush.xpose.msra.mxu0 0.0
    %203 = vmatpush.xpose.msra.mxu0 %v187
    %204 = vmatpush.xpose.msra.mxu0 %v185
    %205 = vmatmul.f32.gmra.mxu0 %v181
    %v206 = vpop.f32.mrf.mxu0
    %v207 = vadd.f32 0.0, %v206
    %208 = vmatmul.f32.gmra.mxu0 %v183
    %v209 = vpop.f32.mrf.mxu0
    %v210 = vadd.f32 0.0, %v209
    %211 = vdwg.mxu0
    %v212 = vmul.f32 %v207, 0.35355338
    %v213 = vmul.f32 %v210, 0.35355338
    %v214 = vsel %vm172, %v212, -1e+30
    %v215 = vsel %vm173, %v213, -1e+30
    %vm216 = vcmask 130048
    %v217 = vsel %vm216, %v214, -inf
    %218 = vmax.xlane.f32.xlu0 %v217
    %v219 = vpop.xlane.xlu0 %218
    %v220 = vsel %vm216, %v215, -inf
    %221 = vmax.xlane.f32.xlu0 %v220
    %v222 = vpop.xlane.xlu0 %221
    %v223 = vsub.f32 %v214, %v219
    %v224 = vsub.f32 %v215, %v222
    %v225 = vmul.f32 %v223, 1.442695
    %v226 = vpow.pop %v225
    %v227 = vmul.f32 %v224, 1.442695
    %v228 = vpow.pop %v227
    %v229 = vsel %vm216, %v226, 0.0
    %230 = vadd.xlane.f32.xlu0 %v229
    %v231 = vpop.xlane.xlu0 %230
    %v232 = vsel %vm216, %v228, 0.0
    %233 = vadd.xlane.f32.xlu0 %v232
    %v234 = vpop.xlane.xlu0 %233
    %v235 = vrcp.pop %v231
    %v236 = vmul.f32 %v231, %v235
    %v237 = vsub.f32 1.0, %v236
    %v238 = vmul.f32 %v235, %v237
    %v239 = vadd.f32 %v235, %v238
    %vm240 = vweird.f32 %v231
    %vm241 = vweird.f32 %v235
    %vm242 = vmor %vm240, %vm241
    %v243 = vsel %vm242, %v235, %v239
    %v244 = vand.u32 2147483647, %v231
    %vm245 = vcmp.eq.f32.partialorder %v244, 8.507059e+37
    %v246 = vand.u32 %v231, 2147483648
    %v247 = vor.u32 1.1754944e-38, %v246
    %v248 = vsel %vm245, %v247, %v243
    %v249 = vmul.f32 %v226, %v248
    %v250 = vrcp.pop %v234
    %v251 = vmul.f32 %v234, %v250
    %v252 = vsub.f32 1.0, %v251
    %v253 = vmul.f32 %v250, %v252
    %v254 = vadd.f32 %v250, %v253
    %vm255 = vweird.f32 %v234
    %vm256 = vweird.f32 %v250
    %vm257 = vmor %vm255, %vm256
    %v258 = vsel %vm257, %v250, %v254
    %v259 = vand.u32 2147483647, %v234
    %vm260 = vcmp.eq.f32.partialorder %v259, 8.507059e+37
    %v261 = vand.u32 %v234, 2147483648
    %v262 = vor.u32 1.1754944e-38, %v261
    %v263 = vsel %vm260, %v262, %v258
    %v264 = vmul.f32 %v228, %v263
    %265 = vrot.lane.b32.xlu0 %v149, 64
    %v266 = vpop.permute.xlu0 %265
    %267 = vrot.lane.b32.xlu0 %v152, 64
    %v268 = vpop.permute.xlu0 %267
    %v272 = vsel %vm216, %v249, 0
    %v275 = vsel %vm216, %v264, 0
    %277 = vmatpush.msra.mxu0 0.0
    %278 = vmatpush.msra.mxu0 0.0
    %279 = vmatpush.msra.mxu0 0.0
    %280 = vmatpush.msra.mxu0 0.0
    %281 = vmatpush.msra.mxu0 0.0
    %282 = vmatpush.msra.mxu0 0.0
    %283 = vmatpush.msra.mxu0 0.0
    %284 = vmatpush.msra.mxu0 0.0
    %285 = vmatpush.msra.mxu0 0.0
    %286 = vmatpush.msra.mxu0 0.0
    %287 = vmatpush.msra.mxu0 0.0
    %288 = vmatpush.msra.mxu0 0.0
    %289 = vmatpush.msra.mxu0 0.0
    %290 = vmatpush.msra.mxu0 0.0
    %291 = vmatpush.msra.mxu0 %v268
    %292 = vmatpush.msra.mxu0 %v266
    %293 = vmatmul.f32.gmra.mxu0 %v272
    %v294 = vpop.f32.mrf.mxu0
    %v295 = vadd.f32 0.0, %v294
    %296 = vmatmul.f32.gmra.mxu0 %v275
    %v297 = vpop.f32.mrf.mxu0
    %v298 = vadd.f32 0.0, %v297
    %299 = vdwg.mxu0
    %v300 = vld [vmem:[%s5] sm:$0xff]
    %301 = vrot.lane.b32.xlu0 %v149, 120
    %v302 = vpop.permute.xlu0 %301
    %303 = vrot.lane.b32.xlu0 %v152, 120
    %v304 = vpop.permute.xlu0 %303
    %305 = vrot.lane.b32.xlu0 %v149, 88
    %v306 = vpop.permute.xlu0 %305
    %307 = vrot.lane.b32.xlu0 %v152, 88
    %v308 = vpop.permute.xlu0 %307
    %v309 = vsel %vm180, %v302, 0
    %v311 = vsel %vm180, %v304, 0
    %v313 = vsel %vm180, %v306, 0
    %v315 = vsel %vm180, %v308, 0
    %317 = vmatpush.xpose.msra.mxu0 0.0
    %318 = vmatpush.xpose.msra.mxu0 0.0
    %319 = vmatpush.xpose.msra.mxu0 0.0
    %320 = vmatpush.xpose.msra.mxu0 0.0
    %321 = vmatpush.xpose.msra.mxu0 0.0
    %322 = vmatpush.xpose.msra.mxu0 0.0
    %323 = vmatpush.xpose.msra.mxu0 0.0
    %324 = vmatpush.xpose.msra.mxu0 0.0
    %325 = vmatpush.xpose.msra.mxu0 0.0
    %326 = vmatpush.xpose.msra.mxu0 0.0
    %327 = vmatpush.xpose.msra.mxu0 0.0
    %328 = vmatpush.xpose.msra.mxu0 0.0
    %329 = vmatpush.xpose.msra.mxu0 0.0
    %330 = vmatpush.xpose.msra.mxu0 0.0
    %331 = vmatpush.xpose.msra.mxu0 %v315
    %332 = vmatpush.xpose.msra.mxu0 %v313
    %333 = vmatmul.f32.gmra.mxu0 %v309
    %v334 = vpop.f32.mrf.mxu0
    %v335 = vadd.f32 0.0, %v334
    %336 = vmatmul.f32.gmra.mxu0 %v311
    %v337 = vpop.f32.mrf.mxu0
    %v338 = vadd.f32 0.0, %v337
    %339 = vdwg.mxu0
    %v340 = vmul.f32 %v335, 0.35355338
    %v341 = vmul.f32 %v338, 0.35355338
    %v342 = vsel %vm172, %v340, -1e+30
    %v343 = vsel %vm173, %v341, -1e+30
    %v344 = vsel %vm216, %v342, -inf
    %345 = vmax.xlane.f32.xlu0 %v344
    %v346 = vpop.xlane.xlu0 %345
    %v347 = vsel %vm216, %v343, -inf
    %348 = vmax.xlane.f32.xlu0 %v347
    %v349 = vpop.xlane.xlu0 %348
    %v350 = vsub.f32 %v342, %v346
    %v351 = vsub.f32 %v343, %v349
    %v352 = vmul.f32 %v350, 1.442695
    %v353 = vpow.pop %v352
    %v354 = vmul.f32 %v351, 1.442695
    %v355 = vpow.pop %v354
    %v356 = vsel %vm216, %v353, 0.0
    %357 = vadd.xlane.f32.xlu0 %v356
    %v358 = vpop.xlane.xlu0 %357
    %v359 = vsel %vm216, %v355, 0.0
    %360 = vadd.xlane.f32.xlu0 %v359
    %v361 = vpop.xlane.xlu0 %360
    %v362 = vrcp.pop %v358
    %v363 = vmul.f32 %v358, %v362
    %v364 = vsub.f32 1.0, %v363
    %v365 = vmul.f32 %v362, %v364
    %v366 = vadd.f32 %v362, %v365
    %vm367 = vweird.f32 %v358
    %vm368 = vweird.f32 %v362
    %vm369 = vmor %vm367, %vm368
    %v370 = vsel %vm369, %v362, %v366
    %v371 = vand.u32 2147483647, %v358
    %vm372 = vcmp.eq.f32.partialorder %v371, 8.507059e+37
    %v373 = vand.u32 %v358, 2147483648
    %v374 = vor.u32 1.1754944e-38, %v373
    %v375 = vsel %vm372, %v374, %v370
    %v376 = vmul.f32 %v353, %v375
    %v377 = vrcp.pop %v361
    %v378 = vmul.f32 %v361, %v377
    %v379 = vsub.f32 1.0, %v378
    %v380 = vmul.f32 %v377, %v379
    %v381 = vadd.f32 %v377, %v380
    %vm382 = vweird.f32 %v361
    %vm383 = vweird.f32 %v377
    %vm384 = vmor %vm382, %vm383
    %v385 = vsel %vm384, %v377, %v381
    %v386 = vand.u32 2147483647, %v361
    %vm387 = vcmp.eq.f32.partialorder %v386, 8.507059e+37
    %v388 = vand.u32 %v361, 2147483648
    %v389 = vor.u32 1.1754944e-38, %v388
    %v390 = vsel %vm387, %v389, %v385
    %v391 = vmul.f32 %v355, %v390
    %392 = vrot.lane.b32.xlu0 %v149, 56
    %v393 = vpop.permute.xlu0 %392
    %394 = vrot.lane.b32.xlu0 %v152, 56
    %v395 = vpop.permute.xlu0 %394
    %v399 = vsel %vm216, %v376, 0
    %v402 = vsel %vm216, %v391, 0
    %404 = vmatpush.msra.mxu0 0.0
    %405 = vmatpush.msra.mxu0 0.0
    %406 = vmatpush.msra.mxu0 0.0
    %407 = vmatpush.msra.mxu0 0.0
    %408 = vmatpush.msra.mxu0 0.0
    %409 = vmatpush.msra.mxu0 0.0
    %410 = vmatpush.msra.mxu0 0.0
    %411 = vmatpush.msra.mxu0 0.0
    %412 = vmatpush.msra.mxu0 0.0
    %413 = vmatpush.msra.mxu0 0.0
    %414 = vmatpush.msra.mxu0 0.0
    %415 = vmatpush.msra.mxu0 0.0
    %416 = vmatpush.msra.mxu0 0.0
    %417 = vmatpush.msra.mxu0 0.0
    %418 = vmatpush.msra.mxu0 %v395
    %419 = vmatpush.msra.mxu0 %v393
    %420 = vmatmul.f32.gmra.mxu0 %v399
    %v421 = vpop.f32.mrf.mxu0
    %v422 = vadd.f32 0.0, %v421
    %423 = vmatmul.f32.gmra.mxu0 %v402
    %v424 = vpop.f32.mrf.mxu0
    %v425 = vadd.f32 0.0, %v424
    %426 = vdwg.mxu0
    %v427 = vld [vmem:[%s5 + $0x8] sm:$0xff]
    %v429 = vsel %vm180, %v422, 0
    %v432 = vsel %vm180, %v425, 0
    %434 = vmatpush.msra.mxu0 0.0
    %435 = vmatpush.msra.mxu0 0.0
    %436 = vmatpush.msra.mxu0 0.0
    %437 = vmatpush.msra.mxu0 0.0
    %438 = vmatpush.msra.mxu0 0.0
    %439 = vmatpush.msra.mxu0 0.0
    %440 = vmatpush.msra.mxu0 0.0
    %441 = vmatpush.msra.mxu0 0.0
    %442 = vmatpush.msra.mxu0 0.0
    %443 = vmatpush.msra.mxu0 0.0
    %444 = vmatpush.msra.mxu0 0.0
    %445 = vmatpush.msra.mxu0 0.0
    %446 = vmatpush.msra.mxu0 0.0
    %447 = vmatpush.msra.mxu0 0.0
    %448 = vmatpush.msra.mxu0 0.0
    %449 = vmatpush.msra.mxu0 %v427
    %450 = vmatmul.f32.gmra.mxu0 %v429
    %v451 = vpop.f32.mrf.mxu0
    %v452 = vadd.f32 0.0, %v451
    %453 = vmatmul.f32.gmra.mxu0 %v432
    %v454 = vpop.f32.mrf.mxu0
    %v455 = vadd.f32 0.0, %v454
    %456 = vdwg.mxu0
    %v458 = vsel %vm180, %v295, 0
    %v461 = vsel %vm180, %v298, 0
    %463 = vmatpush.msra.mxu0 0.0
    %464 = vmatpush.msra.mxu0 0.0
    %465 = vmatpush.msra.mxu0 0.0
    %466 = vmatpush.msra.mxu0 0.0
    %467 = vmatpush.msra.mxu0 0.0
    %468 = vmatpush.msra.mxu0 0.0
    %469 = vmatpush.msra.mxu0 0.0
    %470 = vmatpush.msra.mxu0 0.0
    %471 = vmatpush.msra.mxu0 0.0
    %472 = vmatpush.msra.mxu0 0.0
    %473 = vmatpush.msra.mxu0 0.0
    %474 = vmatpush.msra.mxu0 0.0
    %475 = vmatpush.msra.mxu0 0.0
    %476 = vmatpush.msra.mxu0 0.0
    %477 = vmatpush.msra.mxu0 0.0
    %478 = vmatpush.msra.mxu0 %v300
    %479 = vmatmul.f32.gmra.mxu0 %v458
    %v480 = vpop.f32.mrf.mxu0
    %v481 = vadd.f32 %v452, %v480
    %482 = vmatmul.f32.gmra.mxu0 %v461
    %v483 = vpop.f32.mrf.mxu0
    %v484 = vadd.f32 %v455, %v483
    %485 = vdwg.mxu0
    %486 = vrot.lane.b32.xlu0 %v149, 112
    %v487 = vpop.permute.xlu0 %486
    %488 = vrot.lane.b32.xlu0 %v152, 112
    %v489 = vpop.permute.xlu0 %488
    %490 = vrot.lane.b32.xlu0 %v149, 80
    %v491 = vpop.permute.xlu0 %490
    %492 = vrot.lane.b32.xlu0 %v152, 80
    %v493 = vpop.permute.xlu0 %492
    %v494 = vsel %vm180, %v487, 0
    %v496 = vsel %vm180, %v489, 0
    %v498 = vsel %vm180, %v491, 0
    %v500 = vsel %vm180, %v493, 0
    %502 = vmatpush.xpose.msra.mxu0 0.0
    %503 = vmatpush.xpose.msra.mxu0 0.0
    %504 = vmatpush.xpose.msra.mxu0 0.0
    %505 = vmatpush.xpose.msra.mxu0 0.0
    %506 = vmatpush.xpose.msra.mxu0 0.0
    %507 = vmatpush.xpose.msra.mxu0 0.0
    %508 = vmatpush.xpose.msra.mxu0 0.0
    %509 = vmatpush.xpose.msra.mxu0 0.0
    %510 = vmatpush.xpose.msra.mxu0 0.0
    %511 = vmatpush.xpose.msra.mxu0 0.0
    %512 = vmatpush.xpose.msra.mxu0 0.0
    %513 = vmatpush.xpose.msra.mxu0 0.0
    %514 = vmatpush.xpose.msra.mxu0 0.0
    %515 = vmatpush.xpose.msra.mxu0 0.0
    %516 = vmatpush.xpose.msra.mxu0 %v500
    %517 = vmatpush.xpose.msra.mxu0 %v498
    %518 = vmatmul.f32.gmra.mxu0 %v494
    %v519 = vpop.f32.mrf.mxu0
    %v520 = vadd.f32 0.0, %v519
    %521 = vmatmul.f32.gmra.mxu0 %v496
    %v522 = vpop.f32.mrf.mxu0
    %v523 = vadd.f32 0.0, %v522
    %524 = vdwg.mxu0
    %v525 = vmul.f32 %v520, 0.35355338
    %v526 = vmul.f32 %v523, 0.35355338
    %v527 = vsel %vm172, %v525, -1e+30
    %v528 = vsel %vm173, %v526, -1e+30
    %v529 = vsel %vm216, %v527, -inf
    %530 = vmax.xlane.f32.xlu0 %v529
    %v531 = vpop.xlane.xlu0 %530
    %v532 = vsel %vm216, %v528, -inf
    %533 = vmax.xlane.f32.xlu0 %v532
    %v534 = vpop.xlane.xlu0 %533
    %v535 = vsub.f32 %v527, %v531
    %v536 = vsub.f32 %v528, %v534
    %v537 = vmul.f32 %v535, 1.442695
    %v538 = vpow.pop %v537
    %v539 = vmul.f32 %v536, 1.442695
    %v540 = vpow.pop %v539
    %v541 = vsel %vm216, %v538, 0.0
    %542 = vadd.xlane.f32.xlu0 %v541
    %v543 = vpop.xlane.xlu0 %542
    %v544 = vsel %vm216, %v540, 0.0
    %545 = vadd.xlane.f32.xlu0 %v544
    %v546 = vpop.xlane.xlu0 %545
    %v547 = vrcp.pop %v543
    %v548 = vmul.f32 %v543, %v547
    %v549 = vsub.f32 1.0, %v548
    %v550 = vmul.f32 %v547, %v549
    %v551 = vadd.f32 %v547, %v550
    %vm552 = vweird.f32 %v543
    %vm553 = vweird.f32 %v547
    %vm554 = vmor %vm552, %vm553
    %v555 = vsel %vm554, %v547, %v551
    %v556 = vand.u32 2147483647, %v543
    %vm557 = vcmp.eq.f32.partialorder %v556, 8.507059e+37
    %v558 = vand.u32 %v543, 2147483648
    %v559 = vor.u32 1.1754944e-38, %v558
    %v560 = vsel %vm557, %v559, %v555
    %v561 = vmul.f32 %v538, %v560
    %v562 = vrcp.pop %v546
    %v563 = vmul.f32 %v546, %v562
    %v564 = vsub.f32 1.0, %v563
    %v565 = vmul.f32 %v562, %v564
    %v566 = vadd.f32 %v562, %v565
    %vm567 = vweird.f32 %v546
    %vm568 = vweird.f32 %v562
    %vm569 = vmor %vm567, %vm568
    %v570 = vsel %vm569, %v562, %v566
    %v571 = vand.u32 2147483647, %v546
    %vm572 = vcmp.eq.f32.partialorder %v571, 8.507059e+37
    %v573 = vand.u32 %v546, 2147483648
    %v574 = vor.u32 1.1754944e-38, %v573
    %v575 = vsel %vm572, %v574, %v570
    %v576 = vmul.f32 %v540, %v575
    %577 = vrot.lane.b32.xlu0 %v149, 48
    %v578 = vpop.permute.xlu0 %577
    %579 = vrot.lane.b32.xlu0 %v152, 48
    %v580 = vpop.permute.xlu0 %579
    %v584 = vsel %vm216, %v561, 0
    %v587 = vsel %vm216, %v576, 0
    %589 = vmatpush.msra.mxu0 0.0
    %590 = vmatpush.msra.mxu0 0.0
    %591 = vmatpush.msra.mxu0 0.0
    %592 = vmatpush.msra.mxu0 0.0
    %593 = vmatpush.msra.mxu0 0.0
    %594 = vmatpush.msra.mxu0 0.0
    %595 = vmatpush.msra.mxu0 0.0
    %596 = vmatpush.msra.mxu0 0.0
    %597 = vmatpush.msra.mxu0 0.0
    %598 = vmatpush.msra.mxu0 0.0
    %599 = vmatpush.msra.mxu0 0.0
    %600 = vmatpush.msra.mxu0 0.0
    %601 = vmatpush.msra.mxu0 0.0
    %602 = vmatpush.msra.mxu0 0.0
    %603 = vmatpush.msra.mxu0 %v580
    %604 = vmatpush.msra.mxu0 %v578
    %605 = vmatmul.f32.gmra.mxu0 %v584
    %v606 = vpop.f32.mrf.mxu0
    %v607 = vadd.f32 0.0, %v606
    %608 = vmatmul.f32.gmra.mxu0 %v587
    %v609 = vpop.f32.mrf.mxu0
    %v610 = vadd.f32 0.0, %v609
    %611 = vdwg.mxu0
    %v612 = vld [vmem:[%s5 + $0x10] sm:$0xff]
    %v614 = vsel %vm180, %v607, 0
    %v617 = vsel %vm180, %v610, 0
    %619 = vmatpush.msra.mxu0 0.0
    %620 = vmatpush.msra.mxu0 0.0
    %621 = vmatpush.msra.mxu0 0.0
    %622 = vmatpush.msra.mxu0 0.0
    %623 = vmatpush.msra.mxu0 0.0
    %624 = vmatpush.msra.mxu0 0.0
    %625 = vmatpush.msra.mxu0 0.0
    %626 = vmatpush.msra.mxu0 0.0
    %627 = vmatpush.msra.mxu0 0.0
    %628 = vmatpush.msra.mxu0 0.0
    %629 = vmatpush.msra.mxu0 0.0
    %630 = vmatpush.msra.mxu0 0.0
    %631 = vmatpush.msra.mxu0 0.0
    %632 = vmatpush.msra.mxu0 0.0
    %633 = vmatpush.msra.mxu0 0.0
    %634 = vmatpush.msra.mxu0 %v612
    %635 = vmatmul.f32.gmra.mxu0 %v614
    %v636 = vpop.f32.mrf.mxu0
    %v637 = vadd.f32 0.0, %v636
    %638 = vmatmul.f32.gmra.mxu0 %v617
    %v639 = vpop.f32.mrf.mxu0
    %v640 = vadd.f32 0.0, %v639
    %641 = vdwg.mxu0
    %v642 = vadd.f32 %v481, %v637
    %v643 = vadd.f32 %v484, %v640
    %644 = vrot.lane.b32.xlu0 %v149, 104
    %v645 = vpop.permute.xlu0 %644
    %646 = vrot.lane.b32.xlu0 %v152, 104
    %v647 = vpop.permute.xlu0 %646
    %648 = vrot.lane.b32.xlu0 %v149, 72
    %v649 = vpop.permute.xlu0 %648
    %650 = vrot.lane.b32.xlu0 %v152, 72
    %v651 = vpop.permute.xlu0 %650
    %v652 = vsel %vm180, %v645, 0
    %v654 = vsel %vm180, %v647, 0
    %v656 = vsel %vm180, %v649, 0
    %v658 = vsel %vm180, %v651, 0
    %660 = vmatpush.xpose.msra.mxu0 0.0
    %661 = vmatpush.xpose.msra.mxu0 0.0
    %662 = vmatpush.xpose.msra.mxu0 0.0
    %663 = vmatpush.xpose.msra.mxu0 0.0
    %664 = vmatpush.xpose.msra.mxu0 0.0
    %665 = vmatpush.xpose.msra.mxu0 0.0
    %666 = vmatpush.xpose.msra.mxu0 0.0
    %667 = vmatpush.xpose.msra.mxu0 0.0
    %668 = vmatpush.xpose.msra.mxu0 0.0
    %669 = vmatpush.xpose.msra.mxu0 0.0
    %670 = vmatpush.xpose.msra.mxu0 0.0
    %671 = vmatpush.xpose.msra.mxu0 0.0
    %672 = vmatpush.xpose.msra.mxu0 0.0
    %673 = vmatpush.xpose.msra.mxu0 0.0
    %674 = vmatpush.xpose.msra.mxu0 %v658
    %675 = vmatpush.xpose.msra.mxu0 %v656
    %676 = vmatmul.f32.gmra.mxu0 %v652
    %v677 = vpop.f32.mrf.mxu0
    %v678 = vadd.f32 0.0, %v677
    %679 = vmatmul.f32.gmra.mxu0 %v654
    %v680 = vpop.f32.mrf.mxu0
    %v681 = vadd.f32 0.0, %v680
    %682 = vdwg.mxu0
    %v683 = vmul.f32 %v678, 0.35355338
    %v684 = vmul.f32 %v681, 0.35355338
    %v685 = vsel %vm172, %v683, -1e+30
    %v686 = vsel %vm173, %v684, -1e+30
    %v687 = vsel %vm216, %v685, -inf
    %688 = vmax.xlane.f32.xlu0 %v687
    %v689 = vpop.xlane.xlu0 %688
    %v690 = vsel %vm216, %v686, -inf
    %691 = vmax.xlane.f32.xlu0 %v690
    %v692 = vpop.xlane.xlu0 %691
    %v693 = vsub.f32 %v685, %v689
    %v694 = vsub.f32 %v686, %v692
    %v695 = vmul.f32 %v693, 1.442695
    %v696 = vpow.pop %v695
    %v697 = vmul.f32 %v694, 1.442695
    %v698 = vpow.pop %v697
    %v699 = vsel %vm216, %v696, 0.0
    %700 = vadd.xlane.f32.xlu0 %v699
    %v701 = vpop.xlane.xlu0 %700
    %v702 = vsel %vm216, %v698, 0.0
    %703 = vadd.xlane.f32.xlu0 %v702
    %v704 = vpop.xlane.xlu0 %703
    %v705 = vrcp.pop %v701
    %v706 = vmul.f32 %v701, %v705
    %v707 = vsub.f32 1.0, %v706
    %v708 = vmul.f32 %v705, %v707
    %v709 = vadd.f32 %v705, %v708
    %vm710 = vweird.f32 %v701
    %vm711 = vweird.f32 %v705
    %vm712 = vmor %vm710, %vm711
    %v713 = vsel %vm712, %v705, %v709
    %v714 = vand.u32 2147483647, %v701
    %vm715 = vcmp.eq.f32.partialorder %v714, 8.507059e+37
    %v716 = vand.u32 %v701, 2147483648
    %v717 = vor.u32 1.1754944e-38, %v716
    %v718 = vsel %vm715, %v717, %v713
    %v719 = vmul.f32 %v696, %v718
    %v720 = vrcp.pop %v704
    %v721 = vmul.f32 %v704, %v720
    %v722 = vsub.f32 1.0, %v721
    %v723 = vmul.f32 %v720, %v722
    %v724 = vadd.f32 %v720, %v723
    %vm725 = vweird.f32 %v704
    %vm726 = vweird.f32 %v720
    %vm727 = vmor %vm725, %vm726
    %v728 = vsel %vm727, %v720, %v724
    %v729 = vand.u32 2147483647, %v704
    %vm730 = vcmp.eq.f32.partialorder %v729, 8.507059e+37
    %v731 = vand.u32 %v704, 2147483648
    %v732 = vor.u32 1.1754944e-38, %v731
    %v733 = vsel %vm730, %v732, %v728
    %v734 = vmul.f32 %v698, %v733
    %735 = vrot.lane.b32.xlu0 %v149, 40
    %v736 = vpop.permute.xlu0 %735
    %737 = vrot.lane.b32.xlu0 %v152, 40
    %v738 = vpop.permute.xlu0 %737
    %v742 = vsel %vm216, %v719, 0
    %v745 = vsel %vm216, %v734, 0
    %747 = vmatpush.msra.mxu0 0.0
    %748 = vmatpush.msra.mxu0 0.0
    %749 = vmatpush.msra.mxu0 0.0
    %750 = vmatpush.msra.mxu0 0.0
    %751 = vmatpush.msra.mxu0 0.0
    %752 = vmatpush.msra.mxu0 0.0
    %753 = vmatpush.msra.mxu0 0.0
    %754 = vmatpush.msra.mxu0 0.0
    %755 = vmatpush.msra.mxu0 0.0
    %756 = vmatpush.msra.mxu0 0.0
    %757 = vmatpush.msra.mxu0 0.0
    %758 = vmatpush.msra.mxu0 0.0
    %759 = vmatpush.msra.mxu0 0.0
    %760 = vmatpush.msra.mxu0 0.0
    %761 = vmatpush.msra.mxu0 %v738
    %762 = vmatpush.msra.mxu0 %v736
    %763 = vmatmul.f32.gmra.mxu0 %v742
    %v764 = vpop.f32.mrf.mxu0
    %v765 = vadd.f32 0.0, %v764
    %766 = vmatmul.f32.gmra.mxu0 %v745
    %v767 = vpop.f32.mrf.mxu0
    %v768 = vadd.f32 0.0, %v767
    %769 = vdwg.mxu0
    %v770 = vld [vmem:[%s5 + $0x18] sm:$0xff]
    %v772 = vsel %vm180, %v765, 0
    %v775 = vsel %vm180, %v768, 0
    %777 = vmatpush.msra.mxu0 0.0
    %778 = vmatpush.msra.mxu0 0.0
    %779 = vmatpush.msra.mxu0 0.0
    %780 = vmatpush.msra.mxu0 0.0
    %781 = vmatpush.msra.mxu0 0.0
    %782 = vmatpush.msra.mxu0 0.0
    %783 = vmatpush.msra.mxu0 0.0
    %784 = vmatpush.msra.mxu0 0.0
    %785 = vmatpush.msra.mxu0 0.0
    %786 = vmatpush.msra.mxu0 0.0
    %787 = vmatpush.msra.mxu0 0.0
    %788 = vmatpush.msra.mxu0 0.0
    %789 = vmatpush.msra.mxu0 0.0
    %790 = vmatpush.msra.mxu0 0.0
    %791 = vmatpush.msra.mxu0 0.0
    %792 = vmatpush.msra.mxu0 %v770
    %793 = vmatmul.f32.gmra.mxu0 %v772
    %v794 = vpop.f32.mrf.mxu0
    %v795 = vadd.f32 0.0, %v794
    %796 = vmatmul.f32.gmra.mxu0 %v775
    %v797 = vpop.f32.mrf.mxu0
    %v798 = vadd.f32 0.0, %v797
    %799 = vdwg.mxu0
    %v800 = vadd.f32 %v642, %v795
    %v801 = vadd.f32 %v643, %v798
    %v802 = vld [vmem:[%s6] sm:$0x1]
    %v804 = vperm.slane %v802, 0
    %v806 = vadd.f32 %v800, %v804
    %v807 = vadd.f32 %v801, %v804
    %v808 = vmul.f32 %v806, 0.9
    %v809 = vmul.f32 %v807, 0.9
    %v810 = vadd.f32 %v808, %v51
    %v811 = vadd.f32 %v809, %v52
    %v812 = vld [vmem:[%s7] sm:$0x1]
    %v813 = vld [vmem:[%s8] sm:$0x1]
    %v814 = vsel %vm55, %v810, 0.0
    %815 = vadd.xlane.f32.xlu0 %v814
    %v816 = vpop.xlane.xlu0 %815
    %v817 = vsel %vm55, %v811, 0.0
    %818 = vadd.xlane.f32.xlu0 %v817
    %v819 = vpop.xlane.xlu0 %818
    %v820 = vmul.f32 %v816, %v68
    %v821 = vmul.f32 %v819, %v68
    %v822 = vsub.f32 %v810, %v820
    %v823 = vsub.f32 %v811, %v821
    %v824 = vmul.f32 %v822, %v822
    %v825 = vmul.f32 %v823, %v823
    %v826 = vsel %vm55, %v824, 0.0
    %827 = vadd.xlane.f32.xlu0 %v826
    %v828 = vpop.xlane.xlu0 %827
    %v829 = vsel %vm55, %v825, 0.0
    %830 = vadd.xlane.f32.xlu0 %v829
    %v831 = vpop.xlane.xlu0 %830
    %v832 = vmul.f32 %v828, %v68
    %v833 = vmul.f32 %v831, %v68
    %v834 = vadd.f32 %v832, 1e-05
    %v835 = vadd.f32 %v833, 1e-05
    %v836 = vrsqrt.pop %v834
    %v837 = vmul.f32 %v836, %v834
    %v838 = vmul.f32 %v837, %v836
    %v839 = vmul.f32 0.5, %v838
    %v840 = vsub.f32 1.5, %v839
    %v841 = vmul.f32 %v836, %v840
    %vm842 = vweird.f32 %v834
    %vm843 = vweird.f32 %v836
    %vm844 = vmor %vm842, %vm843
    %v845 = vsel %vm844, %v836, %v841
    %v846 = vrsqrt.pop %v835
    %v847 = vmul.f32 %v846, %v835
    %v848 = vmul.f32 %v847, %v846
    %v849 = vmul.f32 0.5, %v848
    %v850 = vsub.f32 1.5, %v849
    %v851 = vmul.f32 %v846, %v850
    %vm852 = vweird.f32 %v835
    %vm853 = vweird.f32 %v846
    %vm854 = vmor %vm852, %vm853
    %v855 = vsel %vm854, %v846, %v851
    %v856 = vmul.f32 %v822, %v845
    %v857 = vmul.f32 %v823, %v855
    %v859 = vperm.slane %v812, 0
    %v861 = vmul.f32 %v856, %v859
    %v862 = vmul.f32 %v857, %v859
    %v864 = vperm.slane %v813, 0
    %v866 = vadd.f32 %v861, %v864
    %v867 = vadd.f32 %v862, %v864
    %v868 = vld [vmem:[%s9] sm:$0xff]
    %v869 = vld [vmem:[%s9 + $0x8] sm:$0xff]
    %v870 = vld [vmem:[%s9 + $0x10] sm:$0xff]
    %v871 = vld [vmem:[%s9 + $0x18] sm:$0xff]
    %v873 = vsel %vm55, %v866, 0
    %v876 = vsel %vm55, %v867, 0
    %878 = vmatpush.msra.mxu0 0.0
    %879 = vmatpush.msra.mxu0 0.0
    %880 = vmatpush.msra.mxu0 0.0
    %881 = vmatpush.msra.mxu0 0.0
    %882 = vmatpush.msra.mxu0 0.0
    %883 = vmatpush.msra.mxu0 0.0
    %884 = vmatpush.msra.mxu0 0.0
    %885 = vmatpush.msra.mxu0 0.0
    %886 = vmatpush.msra.mxu0 0.0
    %887 = vmatpush.msra.mxu0 0.0
    %888 = vmatpush.msra.mxu0 0.0
    %889 = vmatpush.msra.mxu0 0.0
    %890 = vmatpush.msra.mxu0 %v871
    %891 = vmatpush.msra.mxu0 %v870
    %892 = vmatpush.msra.mxu0 %v869
    %893 = vmatpush.msra.mxu0 %v868
    %894 = vmatmul.f32.gmra.mxu0 %v873
    %v895 = vpop.f32.mrf.mxu0
    %v896 = vadd.f32 0.0, %v895
    %897 = vmatmul.f32.gmra.mxu0 %v876
    %v898 = vpop.f32.mrf.mxu0
    %v899 = vadd.f32 0.0, %v898
    %900 = vdwg.mxu0
    %vm901 = vcmask 31744
    %v902 = vsel %vm901, %v896, -inf
    %903 = vmax.xlane.f32.xlu0 %v902
    %v904 = vpop.xlane.xlu0 %903
    %v905 = vsel %vm901, %v899, -inf
    %906 = vmax.xlane.f32.xlu0 %v905
    %v907 = vpop.xlane.xlu0 %906
    %v908 = vsub.f32 %v896, %v904
    %v909 = vsub.f32 %v899, %v907
    %v910 = vmul.f32 %v908, 1.442695
    %v911 = vpow.pop %v910
    %v912 = vmul.f32 %v909, 1.442695
    %v913 = vpow.pop %v912
    %v914 = vsel %vm901, %v911, 0.0
    %915 = vadd.xlane.f32.xlu0 %v914
    %v916 = vpop.xlane.xlu0 %915
    %v917 = vsel %vm901, %v913, 0.0
    %918 = vadd.xlane.f32.xlu0 %v917
    %v919 = vpop.xlane.xlu0 %918
    %v920 = vrcp.pop %v916
    %v921 = vmul.f32 %v916, %v920
    %v922 = vsub.f32 1.0, %v921
    %v923 = vmul.f32 %v920, %v922
    %v924 = vadd.f32 %v920, %v923
    %vm925 = vweird.f32 %v916
    %vm926 = vweird.f32 %v920
    %vm927 = vmor %vm925, %vm926
    %v928 = vsel %vm927, %v920, %v924
    %v929 = vand.u32 2147483647, %v916
    %vm930 = vcmp.eq.f32.partialorder %v929, 8.507059e+37
    %v931 = vand.u32 %v916, 2147483648
    %v932 = vor.u32 1.1754944e-38, %v931
    %v933 = vsel %vm930, %v932, %v928
    %v934 = vmul.f32 %v911, %v933
    %v935 = vrcp.pop %v919
    %v936 = vmul.f32 %v919, %v935
    %v937 = vsub.f32 1.0, %v936
    %v938 = vmul.f32 %v935, %v937
    %v939 = vadd.f32 %v935, %v938
    %vm940 = vweird.f32 %v919
    %vm941 = vweird.f32 %v935
    %vm942 = vmor %vm940, %vm941
    %v943 = vsel %vm942, %v935, %v939
    %v944 = vand.u32 2147483647, %v919
    %vm945 = vcmp.eq.f32.partialorder %v944, 8.507059e+37
    %v946 = vand.u32 %v919, 2147483648
    %v947 = vor.u32 1.1754944e-38, %v946
    %v948 = vsel %vm945, %v947, %v943
    %v949 = vmul.f32 %v913, %v948
    %v950 = vsel %vm901, %v934, -inf
    %951 = vmax.xlane.f32.xlu0 %v950
    %v952 = vpop.xlane.xlu0 %951
    %v953 = vsel %vm901, %v949, -inf
    %954 = vmax.xlane.f32.xlu0 %v953
    %v955 = vpop.xlane.xlu0 %954
    %vm956 = vcmp.eq.f32.partialorder %v934, %v952
    %vm957 = vcmp.eq.f32.partialorder %v949, %v955
    %v958 = vsel %vm956, %v158, 4
    %v959 = vsel %vm957, %v158, 4
    %v960 = vsel %vm901, %v958, 2147483647
    %v961 = vand.u32 %v960, 65535
    %v962 = vshra.s32 %v960, 16
    %v963 = vcvt.s32.f32 %v961
    %v964 = vcvt.s32.f32 %v962
    %965 = vmin.xlane.f32.xlu0 %v964
    %v966 = vpop.xlane.xlu0 %965
    %vm967 = vcmp.eq.f32.partialorder %v964, %v966
    %v968 = vsel %vm967, %v963, inf
    %969 = vmin.xlane.f32.xlu0 %v968
    %v970 = vpop.xlane.xlu0 %969
    %v971 = vcvt.f32.s32 %v970
    %v972 = vcvt.f32.s32 %v966
    %v973 = vshll.u32 %v972, 16
    %v974 = vadd.s32 %v973, %v971
    %v975 = vsel %vm901, %v959, 2147483647
    %v976 = vand.u32 %v975, 65535
    %v977 = vshra.s32 %v975, 16
    %v978 = vcvt.s32.f32 %v976
    %v979 = vcvt.s32.f32 %v977
    %980 = vmin.xlane.f32.xlu0 %v979
    %v981 = vpop.xlane.xlu0 %980
    %vm982 = vcmp.eq.f32.partialorder %v979, %v981
    %v983 = vsel %vm982, %v978, inf
    %984 = vmin.xlane.f32.xlu0 %v983
    %v985 = vpop.xlane.xlu0 %984
    %v986 = vcvt.f32.s32 %v985
    %v987 = vcvt.f32.s32 %v981
    %v988 = vshll.u32 %v987, 16
    %v989 = vadd.s32 %v988, %v986
    %vm990 = vcmp.eq.s32.totalorder %v158, %v974
    %vm991 = vcmp.eq.s32.totalorder %v158, %v989
    %v992 = vsel %vm990, -1.0, %v934
    %v993 = vsel %vm991, -1.0, %v949
    %v994 = vsel %vm901, %v992, -inf
    %995 = vmax.xlane.f32.xlu0 %v994
    %v996 = vpop.xlane.xlu0 %995
    %v997 = vsel %vm901, %v993, -inf
    %998 = vmax.xlane.f32.xlu0 %v997
    %v999 = vpop.xlane.xlu0 %998
    %vm1000 = vcmp.eq.f32.partialorder %v992, %v996
    %vm1001 = vcmp.eq.f32.partialorder %v993, %v999
    %v1002 = vsel %vm1000, %v158, 4
    %v1003 = vsel %vm1001, %v158, 4
    %v1004 = vsel %vm901, %v1002, 2147483647
    %v1005 = vand.u32 %v1004, 65535
    %v1006 = vshra.s32 %v1004, 16
    %v1007 = vcvt.s32.f32 %v1005
    %v1008 = vcvt.s32.f32 %v1006
    %1009 = vmin.xlane.f32.xlu0 %v1008
    %v1010 = vpop.xlane.xlu0 %1009
    %vm1011 = vcmp.eq.f32.partialorder %v1008, %v1010
    %v1012 = vsel %vm1011, %v1007, inf
    %1013 = vmin.xlane.f32.xlu0 %v1012
    %v1014 = vpop.xlane.xlu0 %1013
    %v1015 = vcvt.f32.s32 %v1014
    %v1016 = vcvt.f32.s32 %v1010
    %v1017 = vshll.u32 %v1016, 16
    %v1018 = vadd.s32 %v1017, %v1015
    %v1019 = vsel %vm901, %v1003, 2147483647
    %v1020 = vand.u32 %v1019, 65535
    %v1021 = vshra.s32 %v1019, 16
    %v1022 = vcvt.s32.f32 %v1020
    %v1023 = vcvt.s32.f32 %v1021
    %1024 = vmin.xlane.f32.xlu0 %v1023
    %v1025 = vpop.xlane.xlu0 %1024
    %vm1026 = vcmp.eq.f32.partialorder %v1023, %v1025
    %v1027 = vsel %vm1026, %v1022, inf
    %1028 = vmin.xlane.f32.xlu0 %v1027
    %v1029 = vpop.xlane.xlu0 %1028
    %v1030 = vcvt.f32.s32 %v1029
    %v1031 = vcvt.f32.s32 %v1025
    %v1032 = vshll.u32 %v1031, 16
    %v1033 = vadd.s32 %v1032, %v1030
    %vm1034 = vcmp.eq.s32.totalorder %v158, %v1018
    %vm1035 = vcmp.eq.s32.totalorder %v158, %v1033
    %v1036 = vsel %vm990, %v952, 0.0
    %v1037 = vsel %vm991, %v955, 0.0
    %v1038 = vsel %vm1034, %v996, 0.0
    %v1039 = vsel %vm1035, %v999, 0.0
    %v1040 = vadd.f32 %v1036, %v1038
    %v1041 = vadd.f32 %v1037, %v1039
    %v1042 = vadd.f32 %v952, %v996
    %v1043 = vadd.f32 %v955, %v999
    %v1044 = vrcp.pop %v1042
    %v1045 = vmul.f32 %v1042, %v1044
    %v1046 = vsub.f32 1.0, %v1045
    %v1047 = vmul.f32 %v1044, %v1046
    %v1048 = vadd.f32 %v1044, %v1047
    %vm1049 = vweird.f32 %v1042
    %vm1050 = vweird.f32 %v1044
    %vm1051 = vmor %vm1049, %vm1050
    %v1052 = vsel %vm1051, %v1044, %v1048
    %v1053 = vand.u32 2147483647, %v1042
    %vm1054 = vcmp.eq.f32.partialorder %v1053, 8.507059e+37
    %v1055 = vand.u32 %v1042, 2147483648
    %v1056 = vor.u32 1.1754944e-38, %v1055
    %v1057 = vsel %vm1054, %v1056, %v1052
    %v1058 = vmul.f32 %v1040, %v1057
    %v1059 = vrcp.pop %v1043
    %v1060 = vmul.f32 %v1043, %v1059
    %v1061 = vsub.f32 1.0, %v1060
    %v1062 = vmul.f32 %v1059, %v1061
    %v1063 = vadd.f32 %v1059, %v1062
    %vm1064 = vweird.f32 %v1043
    %vm1065 = vweird.f32 %v1059
    %vm1066 = vmor %vm1064, %vm1065
    %v1067 = vsel %vm1066, %v1059, %v1063
    %v1068 = vand.u32 2147483647, %v1043
    %vm1069 = vcmp.eq.f32.partialorder %v1068, 8.507059e+37
    %v1070 = vand.u32 %v1043, 2147483648
    %v1071 = vor.u32 1.1754944e-38, %v1070
    %v1072 = vsel %vm1069, %v1071, %v1067
    %v1073 = vmul.f32 %v1041, %v1072
    %v1074 = vsel %vm990, 1, 0
    %v1075 = vsel %vm991, 1, 0
    %v1076 = vcvt.s32.f32 %v1074
    %v1077 = vcvt.s32.f32 %v1075
    %v1078 = vsel %vm1034, 1, 0
    %v1079 = vsel %vm1035, 1, 0
    %v1080 = vcvt.s32.f32 %v1078
    %v1081 = vcvt.s32.f32 %v1079
    %v1082 = vadd.f32 %v1076, %v1080
    %v1083 = vadd.f32 %v1077, %v1081
    %v1084 = vsel %vm901, %v1082, 0.0
    %v1085 = vsel %vm901, %v1083, 0.0
    %v1086 = vadd.f32 %v1084, %v1085
    %v1087 = vrot.slane %v1086, 4
    %v1088 = vadd.f32 %v1086, %v1087
    %v1089 = vrot.slane %v1088, 2
    %v1090 = vadd.f32 %v1088, %v1089
    %v1091 = vrot.slane %v1090, 1
    %v1092 = vadd.f32 %v1090, %v1091
    %v1093 = vmul.f32 %v1092, 0.03125
    %v1094 = vsel %vm901, %v934, 0.0
    %v1095 = vsel %vm901, %v949, 0.0
    %v1096 = vadd.f32 %v1094, %v1095
    %v1097 = vrot.slane %v1096, 4
    %v1098 = vadd.f32 %v1096, %v1097
    %v1099 = vrot.slane %v1098, 2
    %v1100 = vadd.f32 %v1098, %v1099
    %v1101 = vrot.slane %v1100, 1
    %v1102 = vadd.f32 %v1100, %v1101
    %v1103 = vmul.f32 %v1102, 0.0625
    %v1104 = vmul.f32 %v1093, %v1103
    %vm1105 = vcmask 24576
    %v1106 = vsel %vm1105, %v1104, 0.0
    %1107 = vadd.xlane.f32.xlu0 %v1106
    %v1108 = vpop.xlane.xlu0 %1107
    %v1109 = vrot.slane %v1108, 4
    %v1110 = vadd.f32 %v1108, %v1109
    %v1111 = vrot.slane %v1110, 2
    %v1112 = vadd.f32 %v1110, %v1111
    %v1113 = vrot.slane %v1112, 1
    %v1114 = vadd.f32 %v1112, %v1113
    %s1115 = vtos %v1114
    %s1116 = smul.f32 %s1115, 4.0
    %s1117 = scalar_lea.smem [#allocation5], 0
    %1118 = sst [smem:[%s1117]] %s1116
    %v1119 = vld [vmem:[%s10] sm:$0xff]
    %v1120 = vld [vmem:[%s10 + $0x8] sm:$0xff]
    %v1121 = vld [vmem:[%s10 + $0x10] sm:$0xff]
    %v1122 = vld [vmem:[%s10 + $0x18] sm:$0xff]
    %v1123 = vld [vmem:[%s10 + $0x20] sm:$0xff]
    %v1124 = vld [vmem:[%s10 + $0x28] sm:$0xff]
    %v1125 = vld [vmem:[%s10 + $0x30] sm:$0xff]
    %v1126 = vld [vmem:[%s10 + $0x38] sm:$0xff]
    %v1127 = vld [vmem:[%s11] sm:$0x3]
    %v1129 = vperm.slane %v1127, 0
    %v1130 = vperm.slane %v1127, 1
    %1133 = vmatpush.msra.mxu0 0.0
    %1134 = vmatpush.msra.mxu0 0.0
    %1135 = vmatpush.msra.mxu0 0.0
    %1136 = vmatpush.msra.mxu0 0.0
    %1137 = vmatpush.msra.mxu0 0.0
    %1138 = vmatpush.msra.mxu0 0.0
    %1139 = vmatpush.msra.mxu0 0.0
    %1140 = vmatpush.msra.mxu0 0.0
    %1141 = vmatpush.msra.mxu0 0.0
    %1142 = vmatpush.msra.mxu0 0.0
    %1143 = vmatpush.msra.mxu0 0.0
    %1144 = vmatpush.msra.mxu0 0.0
    %1145 = vmatpush.msra.mxu0 %v1125
    %1146 = vmatpush.msra.mxu0 %v1123
    %1147 = vmatpush.msra.mxu0 %v1121
    %1148 = vmatpush.msra.mxu0 %v1119
    %1149 = vmatmul.f32.gmra.mxu0 %v873
    %v1150 = vpop.f32.mrf.mxu0
    %v1151 = vadd.f32 %v1129, %v1150
    %1152 = vmatmul.f32.gmra.mxu0 %v876
    %v1153 = vpop.f32.mrf.mxu0
    %v1154 = vadd.f32 %v1129, %v1153
    %1155 = vdwg.mxu0
    %1156 = vmatpush.msra.mxu0 0.0
    %1157 = vmatpush.msra.mxu0 0.0
    %1158 = vmatpush.msra.mxu0 0.0
    %1159 = vmatpush.msra.mxu0 0.0
    %1160 = vmatpush.msra.mxu0 0.0
    %1161 = vmatpush.msra.mxu0 0.0
    %1162 = vmatpush.msra.mxu0 0.0
    %1163 = vmatpush.msra.mxu0 0.0
    %1164 = vmatpush.msra.mxu0 0.0
    %1165 = vmatpush.msra.mxu0 0.0
    %1166 = vmatpush.msra.mxu0 0.0
    %1167 = vmatpush.msra.mxu0 0.0
    %1168 = vmatpush.msra.mxu0 %v1126
    %1169 = vmatpush.msra.mxu0 %v1124
    %1170 = vmatpush.msra.mxu0 %v1122
    %1171 = vmatpush.msra.mxu0 %v1120
    %1172 = vmatmul.f32.gmra.mxu0 %v873
    %v1173 = vpop.f32.mrf.mxu0
    %v1174 = vadd.f32 %v1130, %v1173
    %1175 = vmatmul.f32.gmra.mxu0 %v876
    %v1176 = vpop.f32.mrf.mxu0
    %v1177 = vadd.f32 %v1130, %v1176
    %1178 = vdwg.mxu0
    %v1179 = vmul.f32 %v1151, 0.5
    %v1180 = vmul.f32 %v1174, 0.5
    %v1181 = vmul.f32 %v1154, 0.5
    %v1182 = vmul.f32 %v1177, 0.5
    %v1183 = vmul.f32 %v1151, 0.044715
    %v1184 = vmul.f32 %v1174, 0.044715
    %v1185 = vmul.f32 %v1154, 0.044715
    %v1186 = vmul.f32 %v1177, 0.044715
    %v1187 = vmul.f32 %v1183, %v1151
    %v1188 = vmul.f32 %v1184, %v1174
    %v1189 = vmul.f32 %v1185, %v1154
    %v1190 = vmul.f32 %v1186, %v1177
    %v1191 = vmul.f32 %v1187, %v1151
    %v1192 = vmul.f32 %v1188, %v1174
    %v1193 = vmul.f32 %v1189, %v1154
    %v1194 = vmul.f32 %v1190, %v1177
    %v1195 = vadd.f32 %v1151, %v1191
    %v1196 = vadd.f32 %v1174, %v1192
    %v1197 = vadd.f32 %v1154, %v1193
    %v1198 = vadd.f32 %v1177, %v1194
    %v1199 = vmul.f32 %v1195, 0.7978846
    %v1200 = vmul.f32 %v1196, 0.7978846
    %v1201 = vmul.f32 %v1197, 0.7978846
    %v1202 = vmul.f32 %v1198, 0.7978846
    %v1203 = vtanh.pop %v1199
    %v1204 = vtanh.pop %v1200
    %v1205 = vtanh.pop %v1201
    %v1206 = vtanh.pop %v1202
    %v1207 = vadd.f32 %v1203, 1.0
    %v1208 = vadd.f32 %v1204, 1.0
    %v1209 = vadd.f32 %v1205, 1.0
    %v1210 = vadd.f32 %v1206, 1.0
    %v1211 = vmul.f32 %v1179, %v1207
    %v1212 = vmul.f32 %v1180, %v1208
    %v1213 = vmul.f32 %v1181, %v1209
    %v1214 = vmul.f32 %v1182, %v1210
    %v1215 = vadd.s32 %v158, 128
    %v1216 = vmul.u32 %v155, 64
    %vm1217 = vcmp.ge.s32.totalorder %v158, %v1216
    %vm1218 = vcmp.ge.s32.totalorder %v1215, %v1216
    %v1219 = vadd.s32 %v155, 1
    %v1220 = vmul.u32 %v1219, 64
    %vm1221 = vcmp.lt.s32.totalorder %v158, %v1220
    %vm1222 = vcmp.lt.s32.totalorder %v1215, %v1220
    %vm1223 = vmand %vm1217, %vm1221
    %vm1224 = vmand %vm1218, %vm1222
    %v1225 = vsel %vm1223, 1, 0
    %v1226 = vsel %vm1224, 1, 0
    %v1227 = vcvt.s32.f32 %v1225
    %v1228 = vcvt.s32.f32 %v1226
    %v1230 = vsel %vm901, %v1058, 0
    %v1233 = vsel %vm901, %v1073, 0
    %vm1235 = vcmask 1043456
    %v1237 = vsel %vm1235, %v1227, 0
    %v1240 = vsel %vm1235, %v1228, 0
    %1242 = vmatpush.msra.mxu0 0.0
    %1243 = vmatpush.msra.mxu0 0.0
    %1244 = vmatpush.msra.mxu0 0.0
    %1245 = vmatpush.msra.mxu0 0.0
    %1246 = vmatpush.msra.mxu0 0.0
    %1247 = vmatpush.msra.mxu0 0.0
    %1248 = vmatpush.msra.mxu0 0.0
    %1249 = vmatpush.msra.mxu0 0.0
    %1250 = vmatpush.msra.mxu0 0.0
    %1251 = vmatpush.msra.mxu0 0.0
    %1252 = vmatpush.msra.mxu0 0.0
    %1253 = vmatpush.msra.mxu0 0.0
    %1254 = vmatpush.msra.mxu0 0.0
    %1255 = vmatpush.msra.mxu0 0.0
    %1256 = vmatpush.msra.mxu0 0.0
    %1257 = vmatpush.msra.mxu0 %v1237
    %1258 = vmatmul.f32.gmra.mxu0 %v1230
    %v1259 = vpop.f32.mrf.mxu0
    %v1260 = vadd.f32 0.0, %v1259
    %1261 = vmatmul.f32.gmra.mxu0 %v1233
    %v1262 = vpop.f32.mrf.mxu0
    %v1263 = vadd.f32 0.0, %v1262
    %1264 = vdwg.mxu0
    %1265 = vmatpush.msra.mxu0 0.0
    %1266 = vmatpush.msra.mxu0 0.0
    %1267 = vmatpush.msra.mxu0 0.0
    %1268 = vmatpush.msra.mxu0 0.0
    %1269 = vmatpush.msra.mxu0 0.0
    %1270 = vmatpush.msra.mxu0 0.0
    %1271 = vmatpush.msra.mxu0 0.0
    %1272 = vmatpush.msra.mxu0 0.0
    %1273 = vmatpush.msra.mxu0 0.0
    %1274 = vmatpush.msra.mxu0 0.0
    %1275 = vmatpush.msra.mxu0 0.0
    %1276 = vmatpush.msra.mxu0 0.0
    %1277 = vmatpush.msra.mxu0 0.0
    %1278 = vmatpush.msra.mxu0 0.0
    %1279 = vmatpush.msra.mxu0 0.0
    %1280 = vmatpush.msra.mxu0 %v1240
    %1281 = vmatmul.f32.gmra.mxu0 %v1230
    %v1282 = vpop.f32.mrf.mxu0
    %v1283 = vadd.f32 0.0, %v1282
    %1284 = vmatmul.f32.gmra.mxu0 %v1233
    %v1285 = vpop.f32.mrf.mxu0
    %v1286 = vadd.f32 0.0, %v1285
    %1287 = vdwg.mxu0
    %v1288 = vmul.f32 %v1211, %v1260
    %v1289 = vmul.f32 %v1212, %v1283
    %v1290 = vmul.f32 %v1213, %v1263
    %v1291 = vmul.f32 %v1214, %v1286
    %v1292 = vld [vmem:[%s12] sm:$0xff]
    %v1293 = vld [vmem:[%s12 + $0x8] sm:$0xff]
    %v1294 = vld [vmem:[%s12 + $0x10] sm:$0xff]
    %v1295 = vld [vmem:[%s12 + $0x18] sm:$0xff]
    %v1296 = vld [vmem:[%s12 + $0x20] sm:$0xff]
    %v1297 = vld [vmem:[%s12 + $0x28] sm:$0xff]
    %v1298 = vld [vmem:[%s12 + $0x30] sm:$0xff]
    %v1299 = vld [vmem:[%s12 + $0x38] sm:$0xff]
    %v1300 = vld [vmem:[%s12 + $0x40] sm:$0xff]
    %v1301 = vld [vmem:[%s12 + $0x48] sm:$0xff]
    %v1302 = vld [vmem:[%s12 + $0x50] sm:$0xff]
    %v1303 = vld [vmem:[%s12 + $0x58] sm:$0xff]
    %v1304 = vld [vmem:[%s12 + $0x60] sm:$0xff]
    %v1305 = vld [vmem:[%s12 + $0x68] sm:$0xff]
    %v1306 = vld [vmem:[%s12 + $0x70] sm:$0xff]
    %v1307 = vld [vmem:[%s12 + $0x78] sm:$0xff]
    %v1308 = vld [vmem:[%s12 + $0x80] sm:$0xff]
    %v1309 = vld [vmem:[%s12 + $0x88] sm:$0xff]
    %v1310 = vld [vmem:[%s12 + $0x90] sm:$0xff]
    %v1311 = vld [vmem:[%s12 + $0x98] sm:$0xff]
    %v1312 = vld [vmem:[%s12 + $0xa0] sm:$0xff]
    %v1313 = vld [vmem:[%s12 + $0xa8] sm:$0xff]
    %v1314 = vld [vmem:[%s12 + $0xb0] sm:$0xff]
    %v1315 = vld [vmem:[%s12 + $0xb8] sm:$0xff]
    %v1316 = vld [vmem:[%s12 + $0xc0] sm:$0xff]
    %v1317 = vld [vmem:[%s12 + $0xc8] sm:$0xff]
    %v1318 = vld [vmem:[%s12 + $0xd0] sm:$0xff]
    %v1319 = vld [vmem:[%s12 + $0xd8] sm:$0xff]
    %v1320 = vld [vmem:[%s12 + $0xe0] sm:$0xff]
    %v1321 = vld [vmem:[%s12 + $0xe8] sm:$0xff]
    %v1322 = vld [vmem:[%s12 + $0xf0] sm:$0xff]
    %v1323 = vld [vmem:[%s12 + $0xf8] sm:$0xff]
    %v1324 = vld [vmem:[%s13] sm:$0xf]
    %v1326 = vsel %vm1235, %v1324, 0
    %1328 = vmatpush.msra.mxu0 0.0
    %1329 = vmatpush.msra.mxu0 0.0
    %1330 = vmatpush.msra.mxu0 0.0
    %1331 = vmatpush.msra.mxu0 0.0
    %1332 = vmatpush.msra.mxu0 0.0
    %1333 = vmatpush.msra.mxu0 0.0
    %1334 = vmatpush.msra.mxu0 0.0
    %1335 = vmatpush.msra.mxu0 0.0
    %1336 = vmatpush.msra.mxu0 0.0
    %1337 = vmatpush.msra.mxu0 0.0
    %1338 = vmatpush.msra.mxu0 0.0
    %1339 = vmatpush.msra.mxu0 0.0
    %1340 = vmatpush.msra.mxu0 0.0
    %1341 = vmatpush.msra.mxu0 0.0
    %1342 = vmatpush.msra.mxu0 0.0
    %1343 = vmatpush.msra.mxu0 %v1326
    %1344 = vmatmul.f32.gmra.mxu0 %v1230
    %v1345 = vpop.f32.mrf.mxu0
    %v1346 = vadd.f32 0.0, %v1345
    %1347 = vmatmul.f32.gmra.mxu0 %v1233
    %v1348 = vpop.f32.mrf.mxu0
    %v1349 = vadd.f32 0.0, %v1348
    %1350 = vdwg.mxu0
    %1351 = vmatpush.msra.mxu0 %v1307
    %1352 = vmatpush.msra.mxu0 %v1306
    %1353 = vmatpush.msra.mxu0 %v1305
    %1354 = vmatpush.msra.mxu0 %v1304
    %1355 = vmatpush.msra.mxu0 %v1303
    %1356 = vmatpush.msra.mxu0 %v1302
    %1357 = vmatpush.msra.mxu0 %v1301
    %1358 = vmatpush.msra.mxu0 %v1300
    %1359 = vmatpush.msra.mxu0 %v1299
    %1360 = vmatpush.msra.mxu0 %v1298
    %1361 = vmatpush.msra.mxu0 %v1297
    %1362 = vmatpush.msra.mxu0 %v1296
    %1363 = vmatpush.msra.mxu0 %v1295
    %1364 = vmatpush.msra.mxu0 %v1294
    %1365 = vmatpush.msra.mxu0 %v1293
    %1366 = vmatpush.msra.mxu0 %v1292
    %1367 = vmatmul.f32.gmra.mxu0 %v1288
    %v1368 = vpop.f32.mrf.mxu0
    %v1369 = vadd.f32 %v1346, %v1368
    %1370 = vmatmul.f32.gmra.mxu0 %v1290
    %v1371 = vpop.f32.mrf.mxu0
    %v1372 = vadd.f32 %v1349, %v1371
    %1373 = vdwg.mxu0
    %1374 = vmatpush.msra.mxu0 %v1323
    %1375 = vmatpush.msra.mxu0 %v1322
    %1376 = vmatpush.msra.mxu0 %v1321
    %1377 = vmatpush.msra.mxu0 %v1320
    %1378 = vmatpush.msra.mxu0 %v1319
    %1379 = vmatpush.msra.mxu0 %v1318
    %1380 = vmatpush.msra.mxu0 %v1317
    %1381 = vmatpush.msra.mxu0 %v1316
    %1382 = vmatpush.msra.mxu0 %v1315
    %1383 = vmatpush.msra.mxu0 %v1314
    %1384 = vmatpush.msra.mxu0 %v1313
    %1385 = vmatpush.msra.mxu0 %v1312
    %1386 = vmatpush.msra.mxu0 %v1311
    %1387 = vmatpush.msra.mxu0 %v1310
    %1388 = vmatpush.msra.mxu0 %v1309
    %1389 = vmatpush.msra.mxu0 %v1308
    %1390 = vmatmul.f32.gmra.mxu0 %v1289
    %v1391 = vpop.f32.mrf.mxu0
    %v1392 = vadd.f32 %v1369, %v1391
    %1393 = vmatmul.f32.gmra.mxu0 %v1291
    %v1394 = vpop.f32.mrf.mxu0
    %v1395 = vadd.f32 %v1372, %v1394
    %1396 = vdwg.mxu0
    %v1397 = vmul.f32 %v1392, 0.9
    %v1398 = vmul.f32 %v1395, 0.9
    %v1399 = vadd.f32 %v1397, %v810
    %v1400 = vadd.f32 %v1398, %v811
    %1401 = vst.msk [vmem:[#allocation2] sm:$0xff] %vm55, %v1399
    %1402 = vst.msk [vmem:[#allocation2 + $0x8] sm:$0xff] %vm55, %v1400
    // Predicated region
    $region58: #{moe_dolomite_block.1} parent=1 // pred_check
      _
    $region59: #{moe_dolomite_block.1} parent=1 // pred_check_branch
      %1404 = sbr.rel (0) target = $region61
    $region60: #{moe_dolomite_block.1} parent=1 // pred_region
      %1406 = vsyncadd [#allocation3], 0
      %s1407 = sshll.u32 [#allocation2], 4
      %s1408 = int_to_ptr.vmem [resolvable:$true] %s1407
      %s1409 = sshll.u32 %s14, 4
      %s1410 = int_to_ptr.hbm [resolvable:$true] %s1409
      %1415 = dma.vmem_to_hbm [thread:$0]  %s1408, 256, %s1410, [#allocation3], 128, 128, 8
    $region61: #{moe_dolomite_block.1} parent=1 // pred_fallthru
      _
    // Predicated region
    $region62: #{moe_dolomite_block.1} parent=1 // pred_check
      _
    $region63: #{moe_dolomite_block.1} parent=1 // pred_check_branch
      %1417 = sbr.rel (0) target = $region65
    $region64: #{moe_dolomite_block.1} parent=1 // pred_region
      %1419 = vsyncadd [#allocation4], 0
      %s1421 = sshll.u32 %s15, 4
      %s1422 = int_to_ptr.hbm [resolvable:$true] %s1421
      %1424 = dma.smem_to_hbm [#allocation5], 16, %s1422, [#allocation4]
    $region65: #{moe_dolomite_block.1} parent=1 // pred_fallthru
      _
    // Predicated region
    $region66: #{moe_dolomite_block.1} parent=1 // pred_check
      _
    $region67: #{moe_dolomite_block.1} parent=1 // pred_check_branch
      %1426 = sbr.rel (0) target = $region69
    $region68: #{moe_dolomite_block.1} parent=1 // pred_region
      %1428 = dma.done [#allocation3], 256
    $region69: #{moe_dolomite_block.1} parent=1 // pred_fallthru
      _
    // Predicated region
    $region70: #{moe_dolomite_block.1} parent=1 // pred_check
      _
    $region71: #{moe_dolomite_block.1} parent=1 // pred_check_branch
      %1430 = sbr.rel (0) target = $region73
    $region72: #{moe_dolomite_block.1} parent=1 // pred_region
      %1432 = dma.done [#allocation4], 16
    $region73: #{moe_dolomite_block.1} parent=1 // pred_fallthru
      _
    %1433 = sfence
    %1434 = vsyncpa [#allocation3], 1
    %1435 = vsyncpa [#allocation4], 1

</llo_original>
